<compile_context>
chip_gen: v7x
topology: tpu7x:2x2x1
jax: 0.10.0
libtpu: 0.0.40
codegen_flags: <defaults>
</compile_context>

<pallas_src>
import jax
import jax.numpy as jnp
import numpy as np
from jax.experimental import pallas as pl
from jax.experimental.pallas import tpu as pltpu


_LANE = 128      # TPU lane width: last dim of every block is a multiple of this
_SUBLANE = 8     # f32 sublane height: row tiles are multiples of this


def _round_up(x, m):
    return ((x + m - 1) // m) * m


def _pad_to(arr, shape):
    pads = [(0, t - s) for s, t in zip(arr.shape, shape)]
    if all(p == (0, 0) for p in pads):
        return arr
    return jnp.pad(arr, pads)


# ----------------------------------------------------------------------------
# Kernel
# ----------------------------------------------------------------------------
def _make_encoder_kernel(num_blocks, emb_dim_real):
    """Ref layout: x, proj_w, io_bias, [blk_w, blk_vec]?, final_w, out."""
    inv_e = 1.0 / float(emb_dim_real)

    def kernel(*refs):
        idx = 0
        x_ref = refs[idx]; idx += 1                 # (tile, D_pad)  bf16
        wp_ref = refs[idx]; idx += 1                # (D_pad, E_pad) bf16
        iob_ref = refs[idx]; idx += 1               # (2, E_pad)     f32: proj_b, final_b
        if num_blocks > 0:
            blkw_ref = refs[idx]; idx += 1          # (nb, E_pad, E_pad) bf16
            blkv_ref = refs[idx]; idx += 1          # (nb, 3, E_pad)     f32: b, gamma, beta
        wf_ref = refs[idx]; idx += 1                # (E_pad, E_pad) bf16
        out_ref = refs[idx]                         # (tile, E_pad)

        # Projection: bf16 operands on the MXU, f32 accumulation.
        h = jnp.dot(x_ref[...], wp_ref[...], preferred_element_type=jnp.float32)
        h = h + iob_ref[0:1, :]                     # projection bias (f32)

        for blk in range(num_blocks):
            w = blkw_ref[blk]                       # (E_pad, E_pad) bf16
            vec = blkv_ref[blk]                     # (3, E_pad) f32
            y = jnp.dot(h.astype(jnp.bfloat16), w,
                        preferred_element_type=jnp.float32)
            y = y + vec[0:1, :]                     # bias
            y = jnp.maximum(y, 0.0)                 # ReLU
            # LayerNorm over the real feature dim (padded lanes are exactly 0
            # and carry zero gamma/beta, so they drop out of the statistics).
            # Single-pass stats: var = E[y^2] - mu^2  (biased, PyTorch eps=1e-5).
            mu = jnp.sum(y, axis=-1, keepdims=True) * inv_e
            ms = jnp.sum(y * y, axis=-1, keepdims=True) * inv_e
            var = ms - mu * mu
            y = (y - mu) * jax.lax.rsqrt(var + 1e-5)
            h = y * vec[1:2, :] + vec[2:3, :]       # gamma, beta
            # Dropout: eval mode -> identity.

        out = jnp.dot(h.astype(jnp.bfloat16), wf_ref[...],
                      preferred_element_type=jnp.float32)
        out = out + iob_ref[1:2, :]                 # final bias
        out_ref[...] = out.astype(out_ref.dtype)

    return kernel


# ----------------------------------------------------------------------------
# Parameter packing (done once, outside the hot path)
# ----------------------------------------------------------------------------
def pack_params(params):
    """Pad / stack / cast parameters into the kernel's resident-weight layout.

    Weight matrices -> bf16 (MXU operands); biases & LayerNorm affine -> f32,
    packed into stacked arrays so each grid step carries only a handful of
    constant-index inputs (fewer DMA descriptors / sublane-padded tiles).
    Feature dims are zero-padded to a multiple of 128; zero gamma/beta/bias in
    the padded lanes keeps those lanes exactly 0 throughout the chain.
    """
    input_dim, emb_dim = params["proj_w"].shape
    num_blocks = len(params["blocks"])
    d_pad = _round_up(input_dim, _LANE)
    e_pad = _round_up(emb_dim, _LANE)

    proj_w = _pad_to(params["proj_w"], (d_pad, e_pad)).astype(jnp.bfloat16)
    final_w = _pad_to(params["final_w"], (e_pad, e_pad)).astype(jnp.bfloat16)
    io_bias = jnp.stack([
        _pad_to(params["proj_b"].reshape(-1), (e_pad,)),
        _pad_to(params["final_b"].reshape(-1), (e_pad,)),
    ]).astype(jnp.float32)                                   # (2, E_pad)

    packed = dict(
        proj_w=proj_w, final_w=final_w, io_bias=io_bias,
        input_dim=input_dim, emb_dim=emb_dim,
        d_pad=d_pad, e_pad=e_pad, num_blocks=num_blocks,
    )
    if num_blocks > 0:
        packed["blk_w"] = jnp.stack(
            [_pad_to(b["w"], (e_pad, e_pad)) for b in params["blocks"]]
        ).astype(jnp.bfloat16)                               # (nb, E_pad, E_pad)
        packed["blk_vec"] = jnp.stack([
            jnp.stack([_pad_to(b["b"].reshape(-1), (e_pad,)),
                       _pad_to(b["gamma"].reshape(-1), (e_pad,)),
                       _pad_to(b["beta"].reshape(-1), (e_pad,))])
            for b in params["blocks"]
        ]).astype(jnp.float32)                               # (nb, 3, E_pad)
    return packed


# ----------------------------------------------------------------------------
# pallas_call wrapper
# ----------------------------------------------------------------------------
def _pick_row_tile(n_rows):
    # Big problems: 256-512 row tiles amortize per-step overhead, keep the MXU
    # fed and yield many parallel grid steps (2-TC sharding on v7x).
    if n_rows >= 2048:
        return 512
    if n_rows >= 512:
        return 256
    # Small problems: still aim for >= 2 grid steps with 8-row (f32 sublane)
    # granularity so pipelining / megacore are exercised.
    return max(_SUBLANE, _round_up(pl.cdiv(n_rows, 2), _SUBLANE))


def filip_encoder_ffn_pallas(x, packed, *, row_tile=None, out_dtype=jnp.float32):
    """projection + amino_acid_ffn: (n_rows, input_dim) -> (n_rows, emb_dim)."""
    n_rows, input_dim = x.shape
    assert input_dim == packed["input_dim"]
    emb_dim = packed["emb_dim"]
    d_pad, e_pad = packed["d_pad"], packed["e_pad"]
    num_blocks = packed["num_blocks"]

    if row_tile is None:
        row_tile = _pick_row_tile(n_rows)
    row_tile = max(_SUBLANE, _round_up(row_tile, _SUBLANE))
    rows_pad = _round_up(max(n_rows, row_tile), row_tile)
    num_row_tiles = rows_pad // row_tile

    # Pad rows & feature dim (zeros), cast the activation stream to bf16.
    x_p = _pad_to(x, (rows_pad, d_pad)).astype(jnp.bfloat16)

    kernel = _make_encoder_kernel(num_blocks, emb_dim)

    weight_args = [packed["proj_w"], packed["io_bias"]]
    if num_blocks > 0:
        weight_args += [packed["blk_w"], packed["blk_vec"]]
    weight_args += [packed["final_w"]]

    def run(weight_pipeline_mode):
        def const_spec(arr):
            zero = tuple(0 for _ in arr.shape)
            if weight_pipeline_mode is None:
                return pl.BlockSpec(arr.shape, lambda i, _z=zero: _z)
            return pl.BlockSpec(arr.shape, lambda i, _z=zero: _z,
                                pipeline_mode=weight_pipeline_mode)

        in_specs = [pl.BlockSpec((row_tile, d_pad), lambda i: (i, 0))]
        in_specs += [const_spec(a) for a in weight_args]
        out_spec = pl.BlockSpec((row_tile, e_pad), lambda i: (i, 0))

        flops = (2 * rows_pad * d_pad * e_pad
                 + 2 * rows_pad * e_pad * e_pad * (num_blocks + 1))
        bytes_accessed = (x_p.size * x_p.dtype.itemsize
                          + sum(a.size * a.dtype.itemsize for a in weight_args)
                          + rows_pad * e_pad * jnp.dtype(out_dtype).itemsize)
        cost = pl.CostEstimate(flops=flops,
                               transcendentals=rows_pad * num_blocks,
                               bytes_accessed=bytes_accessed)

        return pl.pallas_call(
            kernel,
            out_shape=jax.ShapeDtypeStruct((rows_pad, e_pad), out_dtype),
            grid_spec=pltpu.PrefetchScalarGridSpec(
                num_scalar_prefetch=0,
                grid=(num_row_tiles,),
                in_specs=in_specs,
                out_specs=out_spec,
            ),
            compiler_params=pltpu.CompilerParams(
                dimension_semantics=("parallel",),
                vmem_limit_bytes=64 * 1024 * 1024,
            ),
            cost_estimate=cost,
        )(x_p, *weight_args)

    try:
        # Constant-index weights: single-buffer them (halves their VMEM
        # footprint - matters at real ESM dims, esp. on v7x's 64 MiB VMEM).
        out_p = run(pl.Buffered(1))
    except Exception:
        # TODO(synk): fallback for jax versions whose pallas_call pipeline does
        # not accept pipeline_mode/Buffered(1); identical math, default buffering.
        out_p = run(None)

    return out_p[:n_rows, :emb_dim]


# ----------------------------------------------------------------------------
# Full module forward + parameter init + reference
# ----------------------------------------------------------------------------
def init_params(key, input_dim, embedding_dim, h1):
    """Deterministic parameter init mirroring the module's shapes (f32 master).
    Weights stored as (in, out) so the kernel does x @ W + b."""
    keys = jax.random.split(key, h1 + 1)
    k_i = iter(keys)

    def lin(k, fan_in, fan_out):
        scale = 1.0 / np.sqrt(fan_in)
        w = jax.random.uniform(k, (fan_in, fan_out), jnp.float32, -scale, scale)
        b = jnp.zeros((1, fan_out), jnp.float32) + 0.01
        return w, b

    proj_w, proj_b = lin(next(k_i), input_dim, embedding_dim)
    blocks = []
    for _ in range(h1 - 1):
        w, b = lin(next(k_i), embedding_dim, embedding_dim)
        blocks.append(dict(w=w, b=b,
                           gamma=jnp.ones((1, embedding_dim), jnp.float32),
                           beta=jnp.zeros((1, embedding_dim), jnp.float32)))
    final_w, final_b = lin(next(k_i), embedding_dim, embedding_dim)
    return dict(proj_w=proj_w, proj_b=proj_b, blocks=blocks,
                final_w=final_w, final_b=final_b)


def filip_encoder_forward(seq, packed_params, token_embed_table):
    """FILIPEncoder.forward equivalent.

    seq: dict with 'input_ids' (B,S) int32, 'attention_mask' (B,S), 'temperature'.
    Returns (amino_acid_embedding (B,S,embedding_dim), attention_mask).
    """
    input_ids = seq["input_ids"]
    attn_mask = seq["attention_mask"]
    _ = seq["temperature"]  # carried in the dict but unused in forward (matches PyTorch)

    # TODO(synk): the pretrained ESM transformer has no in-script equivalent;
    # replaced by a deterministic token-embedding lookup producing last_hidden_state.
    esm_embedding = token_embed_table[input_ids]      # (B, S, input_dim), plain-JAX glue

    B, S, Din = esm_embedding.shape
    x = esm_embedding.reshape(B * S, Din)
    out = filip_encoder_ffn_pallas(x, packed_params)
    return out.reshape(B, S, packed_params["emb_dim"]), attn_mask


def _reference_forward(x, params):
    """Pure-JAX reference of projection + amino_acid_ffn (eval mode), emulating
    the kernel's numerics (bf16 matmul operands, f32 accumulation/elementwise)."""
    bf = lambda a: a.astype(jnp.bfloat16)
    dot = lambda a, b: jnp.dot(bf(a), bf(b), preferred_element_type=jnp.float32)
    h = dot(x, params["proj_w"]) + params["proj_b"]
    for blk in params["blocks"]:
        y = dot(h, blk["w"]) + blk["b"]
        y = jnp.maximum(y, 0.0)
        mu = jnp.mean(y, axis=-1, keepdims=True)
        var = jnp.mean(jnp.square(y - mu), axis=-1, keepdims=True)
        y = (y - mu) * jax.lax.rsqrt(var + 1e-5)
        h = y * blk["gamma"] + blk["beta"]
    return dot(h, params["final_w"]) + params["final_b"]


if __name__ == "__main__":
    # Small, forward-consistent shapes.
    B, S = 2, 8
    vocab_size = 33
    input_dim = 32       # ESM hidden size stand-in (real ESM: 320-2560)
    embedding_dim = 32
    h1 = 3               # amino_acid_ffn depth -> 2 [Linear,ReLU,LN,Dropout] blocks + final Linear
    dropout_rate = 0.1   # eval mode -> unused

    key = jax.random.PRNGKey(0)
    k_ids, k_tbl, k_params = jax.random.split(key, 3)

    input_ids = jax.random.randint(k_ids, (B, S), 0, vocab_size, dtype=jnp.int32)
    attention_mask = jnp.ones((B, S), dtype=jnp.int32)
    seq = {
        "input_ids": input_ids,
        "attention_mask": attention_mask,
        "temperature": jnp.float32(0.07),
    }

    token_embed_table = (
        jax.random.normal(k_tbl, (vocab_size, input_dim), jnp.float32) * 0.1
    )
    params = init_params(k_params, input_dim, embedding_dim, h1)
    packed = pack_params(params)

    amino_acid_embedding, out_mask = filip_encoder_forward(
        seq, packed, token_embed_table
    )
    jax.block_until_ready(amino_acid_embedding)

    # Cross-check against the pure-JAX reference (bf16 matmul operands, so
    # tolerances are set for bf16 rounding of the operands).
    x_flat = token_embed_table[input_ids].reshape(B * S, input_dim)
    ref = _reference_forward(x_flat, params).reshape(B, S, embedding_dim)
    np.testing.assert_allclose(
        np.asarray(amino_acid_embedding), np.asarray(ref), rtol=1e-2, atol=1e-2
    )
    assert amino_acid_embedding.shape == (B, S, embedding_dim)
    assert out_mask.shape == (B, S)

    print("KERNEL_OK")
</pallas_src>

<mosaic_0001>
module attributes {stable_mosaic.version = 11 : i64} {
  func.func @kernel(%arg0: i32, %arg1: memref<8x128xbf16, #tpu.memory_space<vmem>>, %arg2: memref<128x128xbf16, #tpu.memory_space<vmem>>, %arg3: memref<2x128xf32, #tpu.memory_space<vmem>>, %arg4: memref<2x128x128xbf16, #tpu.memory_space<vmem>>, %arg5: memref<2x3x128xf32, #tpu.memory_space<vmem>>, %arg6: memref<128x128xbf16, #tpu.memory_space<vmem>>, %arg7: memref<8x128xf32, #tpu.memory_space<vmem>>) attributes {dimension_semantics = [#tpu.dimension_semantics<parallel>], iteration_bounds = array<i64: 2>, scalar_prefetch = 0 : i64, scratch_operands = 0 : i64, tpu.core_type = #tpu.core_type<tc>, window_params = [{transform_indices = @transform_0, window_bounds = array<i64: 8, 128>}, {pipeline_mode = #tpu.pipeline_mode<synchronous>, transform_indices = @transform_1, window_bounds = array<i64: 128, 128>}, {pipeline_mode = #tpu.pipeline_mode<synchronous>, transform_indices = @transform_2, window_bounds = array<i64: 2, 128>}, {pipeline_mode = #tpu.pipeline_mode<synchronous>, transform_indices = @transform_3, window_bounds = array<i64: 2, 128, 128>}, {pipeline_mode = #tpu.pipeline_mode<synchronous>, transform_indices = @transform_4, window_bounds = array<i64: 2, 3, 128>}, {pipeline_mode = #tpu.pipeline_mode<synchronous>, transform_indices = @transform_5, window_bounds = array<i64: 128, 128>}, {transform_indices = @transform_6, window_bounds = array<i64: 8, 128>}]} {
    %c0 = arith.constant 0 : index
    %c0_0 = arith.constant 0 : index
    %0 = vector.load %arg1[%c0, %c0_0] : memref<8x128xbf16, #tpu.memory_space<vmem>>, vector<8x128xbf16>
    %c0_1 = arith.constant 0 : index
    %c0_2 = arith.constant 0 : index
    %1 = vector.load %arg2[%c0_1, %c0_2] : memref<128x128xbf16, #tpu.memory_space<vmem>>, vector<128x128xbf16>
    %cst = arith.constant dense<0.000000e+00> : vector<8x128xf32>
    %2 = tpu.matmul %0, %1, %cst {dimension_numbers = #tpu.dot_dimension_numbers<[1], [0], [0], [1], [0, 0, 1, 1], [], []>} : vector<8x128xbf16>, vector<128x128xbf16>, vector<8x128xf32> -> vector<8x128xf32>
    %c0_3 = arith.constant 0 : index
    %c0_4 = arith.constant 0 : index
    %3 = vector.load %arg3[%c0_3, %c0_4] : memref<2x128xf32, #tpu.memory_space<vmem>>, vector<1x128xf32>
    %4 = vector.broadcast %3 : vector<1x128xf32> to vector<8x128xf32>
    %5 = arith.addf %2, %4 : vector<8x128xf32>
    %c0_5 = arith.constant 0 : index
    %c0_6 = arith.constant 0 : index
    %c0_7 = arith.constant 0 : index
    %6 = vector.load %arg4[%c0_5, %c0_6, %c0_7] : memref<2x128x128xbf16, #tpu.memory_space<vmem>>, vector<1x128x128xbf16>
    %7 = vector.shape_cast %6 : vector<1x128x128xbf16> to vector<128x128xbf16>
    %c0_8 = arith.constant 0 : index
    %c0_9 = arith.constant 0 : index
    %c0_10 = arith.constant 0 : index
    %8 = vector.load %arg5[%c0_8, %c0_9, %c0_10] : memref<2x3x128xf32, #tpu.memory_space<vmem>>, vector<1x3x128xf32>
    %9 = vector.shape_cast %8 : vector<1x3x128xf32> to vector<3x128xf32>
    %10 = arith.truncf %5 : vector<8x128xf32> to vector<8x128xbf16>
    %cst_11 = arith.constant dense<0.000000e+00> : vector<8x128xf32>
    %11 = tpu.matmul %10, %7, %cst_11 {dimension_numbers = #tpu.dot_dimension_numbers<[1], [0], [0], [1], [0, 0, 1, 1], [], []>} : vector<8x128xbf16>, vector<128x128xbf16>, vector<8x128xf32> -> vector<8x128xf32>
    %12 = vector.extract_strided_slice %9 {offsets = [0, 0], sizes = [1, 128], strides = [1, 1]} : vector<3x128xf32> to vector<1x128xf32>
    %13 = vector.broadcast %12 : vector<1x128xf32> to vector<8x128xf32>
    %14 = arith.addf %11, %13 : vector<8x128xf32>
    %cst_12 = arith.constant 0.000000e+00 : f32
    %15 = vector.broadcast %cst_12 : f32 to vector<8x128xf32>
    %16 = arith.maximumf %14, %15 : vector<8x128xf32>
    %cst_13 = arith.constant dense<0.000000e+00> : vector<8xf32>
    %17 = vector.multi_reduction <add>, %16, %cst_13 [1] : vector<8x128xf32> to vector<8xf32>
    %18 = vector.shape_cast %17 : vector<8xf32> to vector<8x1xf32>
    %cst_14 = arith.constant 3.125000e-02 : f32
    %19 = vector.broadcast %cst_14 : f32 to vector<8x1xf32>
    %20 = arith.mulf %18, %19 : vector<8x1xf32>
    %21 = arith.mulf %16, %16 : vector<8x128xf32>
    %cst_15 = arith.constant dense<0.000000e+00> : vector<8xf32>
    %22 = vector.multi_reduction <add>, %21, %cst_15 [1] : vector<8x128xf32> to vector<8xf32>
    %23 = vector.shape_cast %22 : vector<8xf32> to vector<8x1xf32>
    %cst_16 = arith.constant 3.125000e-02 : f32
    %24 = vector.broadcast %cst_16 : f32 to vector<8x1xf32>
    %25 = arith.mulf %23, %24 : vector<8x1xf32>
    %26 = arith.mulf %20, %20 : vector<8x1xf32>
    %27 = arith.subf %25, %26 : vector<8x1xf32>
    %28 = vector.broadcast %20 : vector<8x1xf32> to vector<8x128xf32>
    %29 = arith.subf %16, %28 : vector<8x128xf32>
    %cst_17 = arith.constant 9.99999974E-6 : f32
    %30 = vector.broadcast %cst_17 : f32 to vector<8x1xf32>
    %31 = arith.addf %27, %30 : vector<8x1xf32>
    %32 = math.rsqrt %31 : vector<8x1xf32>
    %33 = vector.broadcast %32 : vector<8x1xf32> to vector<8x128xf32>
    %34 = arith.mulf %29, %33 : vector<8x128xf32>
    %35 = vector.extract_strided_slice %9 {offsets = [1, 0], sizes = [1, 128], strides = [1, 1]} : vector<3x128xf32> to vector<1x128xf32>
    %36 = vector.broadcast %35 : vector<1x128xf32> to vector<8x128xf32>
    %37 = arith.mulf %34, %36 : vector<8x128xf32>
    %38 = vector.extract_strided_slice %9 {offsets = [2, 0], sizes = [1, 128], strides = [1, 1]} : vector<3x128xf32> to vector<1x128xf32>
    %39 = vector.broadcast %38 : vector<1x128xf32> to vector<8x128xf32>
    %40 = arith.addf %37, %39 : vector<8x128xf32>
    %c1 = arith.constant 1 : index
    %c0_18 = arith.constant 0 : index
    %c0_19 = arith.constant 0 : index
    %41 = vector.load %arg4[%c1, %c0_18, %c0_19] : memref<2x128x128xbf16, #tpu.memory_space<vmem>>, vector<1x128x128xbf16>
    %42 = vector.shape_cast %41 : vector<1x128x128xbf16> to vector<128x128xbf16>
    %c1_20 = arith.constant 1 : index
    %c0_21 = arith.constant 0 : index
    %c0_22 = arith.constant 0 : index
    %43 = vector.load %arg5[%c1_20, %c0_21, %c0_22] : memref<2x3x128xf32, #tpu.memory_space<vmem>>, vector<1x3x128xf32>
    %44 = vector.shape_cast %43 : vector<1x3x128xf32> to vector<3x128xf32>
    %45 = arith.truncf %40 : vector<8x128xf32> to vector<8x128xbf16>
    %cst_23 = arith.constant dense<0.000000e+00> : vector<8x128xf32>
    %46 = tpu.matmul %45, %42, %cst_23 {dimension_numbers = #tpu.dot_dimension_numbers<[1], [0], [0], [1], [0, 0, 1, 1], [], []>} : vector<8x128xbf16>, vector<128x128xbf16>, vector<8x128xf32> -> vector<8x128xf32>
    %47 = vector.extract_strided_slice %44 {offsets = [0, 0], sizes = [1, 128], strides = [1, 1]} : vector<3x128xf32> to vector<1x128xf32>
    %48 = vector.broadcast %47 : vector<1x128xf32> to vector<8x128xf32>
    %49 = arith.addf %46, %48 : vector<8x128xf32>
    %cst_24 = arith.constant 0.000000e+00 : f32
    %50 = vector.broadcast %cst_24 : f32 to vector<8x128xf32>
    %51 = arith.maximumf %49, %50 : vector<8x128xf32>
    %cst_25 = arith.constant dense<0.000000e+00> : vector<8xf32>
    %52 = vector.multi_reduction <add>, %51, %cst_25 [1] : vector<8x128xf32> to vector<8xf32>
    %53 = vector.shape_cast %52 : vector<8xf32> to vector<8x1xf32>
    %cst_26 = arith.constant 3.125000e-02 : f32
    %54 = vector.broadcast %cst_26 : f32 to vector<8x1xf32>
    %55 = arith.mulf %53, %54 : vector<8x1xf32>
    %56 = arith.mulf %51, %51 : vector<8x128xf32>
    %cst_27 = arith.constant dense<0.000000e+00> : vector<8xf32>
    %57 = vector.multi_reduction <add>, %56, %cst_27 [1] : vector<8x128xf32> to vector<8xf32>
    %58 = vector.shape_cast %57 : vector<8xf32> to vector<8x1xf32>
    %cst_28 = arith.constant 3.125000e-02 : f32
    %59 = vector.broadcast %cst_28 : f32 to vector<8x1xf32>
    %60 = arith.mulf %58, %59 : vector<8x1xf32>
    %61 = arith.mulf %55, %55 : vector<8x1xf32>
    %62 = arith.subf %60, %61 : vector<8x1xf32>
    %63 = vector.broadcast %55 : vector<8x1xf32> to vector<8x128xf32>
    %64 = arith.subf %51, %63 : vector<8x128xf32>
    %cst_29 = arith.constant 9.99999974E-6 : f32
    %65 = vector.broadcast %cst_29 : f32 to vector<8x1xf32>
    %66 = arith.addf %62, %65 : vector<8x1xf32>
    %67 = math.rsqrt %66 : vector<8x1xf32>
    %68 = vector.broadcast %67 : vector<8x1xf32> to vector<8x128xf32>
    %69 = arith.mulf %64, %68 : vector<8x128xf32>
    %70 = vector.extract_strided_slice %44 {offsets = [1, 0], sizes = [1, 128], strides = [1, 1]} : vector<3x128xf32> to vector<1x128xf32>
    %71 = vector.broadcast %70 : vector<1x128xf32> to vector<8x128xf32>
    %72 = arith.mulf %69, %71 : vector<8x128xf32>
    %73 = vector.extract_strided_slice %44 {offsets = [2, 0], sizes = [1, 128], strides = [1, 1]} : vector<3x128xf32> to vector<1x128xf32>
    %74 = vector.broadcast %73 : vector<1x128xf32> to vector<8x128xf32>
    %75 = arith.addf %72, %74 : vector<8x128xf32>
    %76 = arith.truncf %75 : vector<8x128xf32> to vector<8x128xbf16>
    %c0_30 = arith.constant 0 : index
    %c0_31 = arith.constant 0 : index
    %77 = vector.load %arg6[%c0_30, %c0_31] : memref<128x128xbf16, #tpu.memory_space<vmem>>, vector<128x128xbf16>
    %cst_32 = arith.constant dense<0.000000e+00> : vector<8x128xf32>
    %78 = tpu.matmul %76, %77, %cst_32 {dimension_numbers = #tpu.dot_dimension_numbers<[1], [0], [0], [1], [0, 0, 1, 1], [], []>} : vector<8x128xbf16>, vector<128x128xbf16>, vector<8x128xf32> -> vector<8x128xf32>
    %c1_33 = arith.constant 1 : index
    %c0_34 = arith.constant 0 : index
    %79 = vector.load %arg3[%c1_33, %c0_34] : memref<2x128xf32, #tpu.memory_space<vmem>>, vector<1x128xf32>
    %80 = vector.broadcast %79 : vector<1x128xf32> to vector<8x128xf32>
    %81 = arith.addf %78, %80 : vector<8x128xf32>
    %c0_35 = arith.constant 0 : index
    %c0_36 = arith.constant 0 : index
    %82 = vector.load %arg7[%c0_35, %c0_36] : memref<8x128xf32, #tpu.memory_space<vmem>>, vector<8x128xf32>
    tpu.vector_store %arg7[%c0_35, %c0_36], %81 {strides = array<i32>} : memref<8x128xf32, #tpu.memory_space<vmem>>, vector<8x128xf32>,
    return
  }
  func.func @transform_0(%arg0: i32) -> (i32, i32) {
    %c0_i32 = arith.constant 0 : i32
    %c0_i32_0 = arith.constant 0 : i32
    return %arg0, %c0_i32 : i32, i32
  }
  func.func @transform_1(%arg0: i32) -> (i32, i32) {
    %c0_i32 = arith.constant 0 : i32
    %c0_i32_0 = arith.constant 0 : i32
    %c0_i32_1 = arith.constant 0 : i32
    return %c0_i32, %c0_i32_0 : i32, i32
  }
  func.func @transform_2(%arg0: i32) -> (i32, i32) {
    %c0_i32 = arith.constant 0 : i32
    %c0_i32_0 = arith.constant 0 : i32
    %c0_i32_1 = arith.constant 0 : i32
    return %c0_i32, %c0_i32_0 : i32, i32
  }
  func.func @transform_3(%arg0: i32) -> (i32, i32, i32) {
    %c0_i32 = arith.constant 0 : i32
    %c0_i32_0 = arith.constant 0 : i32
    %c0_i32_1 = arith.constant 0 : i32
    %c0_i32_2 = arith.constant 0 : i32
    return %c0_i32, %c0_i32_0, %c0_i32_1 : i32, i32, i32
  }
  func.func @transform_4(%arg0: i32) -> (i32, i32, i32) {
    %c0_i32 = arith.constant 0 : i32
    %c0_i32_0 = arith.constant 0 : i32
    %c0_i32_1 = arith.constant 0 : i32
    %c0_i32_2 = arith.constant 0 : i32
    return %c0_i32, %c0_i32_0, %c0_i32_1 : i32, i32, i32
  }
  func.func @transform_5(%arg0: i32) -> (i32, i32) {
    %c0_i32 = arith.constant 0 : i32
    %c0_i32_0 = arith.constant 0 : i32
    %c0_i32_1 = arith.constant 0 : i32
    return %c0_i32, %c0_i32_0 : i32, i32
  }
  func.func @transform_6(%arg0: i32) -> (i32, i32) {
    %c0_i32 = arith.constant 0 : i32
    %c0_i32_0 = arith.constant 0 : i32
    return %arg0, %c0_i32 : i32, i32
  }
}

module attributes {stable_mosaic.version = 11 : i64} {
  func.func @kernel(%arg0: i32, %arg1: memref<8x128xbf16, #tpu.memory_space<vmem>>, %arg2: memref<128x128xbf16, #tpu.memory_space<vmem>>, %arg3: memref<2x128xf32, #tpu.memory_space<vmem>>, %arg4: memref<2x128x128xbf16, #tpu.memory_space<vmem>>, %arg5: memref<2x3x128xf32, #tpu.memory_space<vmem>>, %arg6: memref<128x128xbf16, #tpu.memory_space<vmem>>, %arg7: memref<8x128xf32, #tpu.memory_space<vmem>>) attributes {dimension_semantics = [#tpu.dimension_semantics<parallel>], iteration_bounds = array<i64: 2>, scalar_prefetch = 0 : i64, scratch_operands = 0 : i64, tpu.core_type = #tpu.core_type<tc>, window_params = [{transform_indices = @transform_0, window_bounds = array<i64: 8, 128>}, {pipeline_mode = #tpu.pipeline_mode<synchronous>, transform_indices = @transform_1, window_bounds = array<i64: 128, 128>}, {pipeline_mode = #tpu.pipeline_mode<synchronous>, transform_indices = @transform_2, window_bounds = array<i64: 2, 128>}, {pipeline_mode = #tpu.pipeline_mode<synchronous>, transform_indices = @transform_3, window_bounds = array<i64: 2, 128, 128>}, {pipeline_mode = #tpu.pipeline_mode<synchronous>, transform_indices = @transform_4, window_bounds = array<i64: 2, 3, 128>}, {pipeline_mode = #tpu.pipeline_mode<synchronous>, transform_indices = @transform_5, window_bounds = array<i64: 128, 128>}, {transform_indices = @transform_6, window_bounds = array<i64: 8, 128>}]} {
    %c0 = arith.constant 0 : index
    %c0_0 = arith.constant 0 : index
    %0 = vector.load %arg1[%c0, %c0_0] : memref<8x128xbf16, #tpu.memory_space<vmem>>, vector<8x128xbf16>
    %c0_1 = arith.constant 0 : index
    %c0_2 = arith.constant 0 : index
    %1 = vector.load %arg2[%c0_1, %c0_2] : memref<128x128xbf16, #tpu.memory_space<vmem>>, vector<128x128xbf16>
    %cst = arith.constant dense<0.000000e+00> : vector<8x128xf32>
    %2 = tpu.matmul %0, %1, %cst {dimension_numbers = #tpu.dot_dimension_numbers<[1], [0], [0], [1], [0, 0, 1, 1], [], []>} : vector<8x128xbf16>, vector<128x128xbf16>, vector<8x128xf32> -> vector<8x128xf32>
    %c0_3 = arith.constant 0 : index
    %c0_4 = arith.constant 0 : index
    %3 = vector.load %arg3[%c0_3, %c0_4] : memref<2x128xf32, #tpu.memory_space<vmem>>, vector<1x128xf32>
    %4 = vector.broadcast %3 : vector<1x128xf32> to vector<8x128xf32>
    %5 = arith.addf %2, %4 : vector<8x128xf32>
    %c0_5 = arith.constant 0 : index
    %c0_6 = arith.constant 0 : index
    %c0_7 = arith.constant 0 : index
    %6 = vector.load %arg4[%c0_5, %c0_6, %c0_7] : memref<2x128x128xbf16, #tpu.memory_space<vmem>>, vector<1x128x128xbf16>
    %7 = vector.shape_cast %6 : vector<1x128x128xbf16> to vector<128x128xbf16>
    %c0_8 = arith.constant 0 : index
    %c0_9 = arith.constant 0 : index
    %c0_10 = arith.constant 0 : index
    %8 = vector.load %arg5[%c0_8, %c0_9, %c0_10] : memref<2x3x128xf32, #tpu.memory_space<vmem>>, vector<1x3x128xf32>
    %9 = vector.shape_cast %8 : vector<1x3x128xf32> to vector<3x128xf32>
    %10 = arith.truncf %5 : vector<8x128xf32> to vector<8x128xbf16>
    %cst_11 = arith.constant dense<0.000000e+00> : vector<8x128xf32>
    %11 = tpu.matmul %10, %7, %cst_11 {dimension_numbers = #tpu.dot_dimension_numbers<[1], [0], [0], [1], [0, 0, 1, 1], [], []>} : vector<8x128xbf16>, vector<128x128xbf16>, vector<8x128xf32> -> vector<8x128xf32>
    %12 = vector.extract_strided_slice %9 {offsets = [0, 0], sizes = [1, 128], strides = [1, 1]} : vector<3x128xf32> to vector<1x128xf32>
    %13 = vector.broadcast %12 : vector<1x128xf32> to vector<8x128xf32>
    %14 = arith.addf %11, %13 : vector<8x128xf32>
    %cst_12 = arith.constant 0.000000e+00 : f32
    %15 = vector.broadcast %cst_12 : f32 to vector<8x128xf32>
    %16 = arith.maximumf %14, %15 : vector<8x128xf32>
    %cst_13 = arith.constant dense<0.000000e+00> : vector<8xf32>
    %17 = vector.multi_reduction <add>, %16, %cst_13 [1] : vector<8x128xf32> to vector<8xf32>
    %18 = vector.shape_cast %17 : vector<8xf32> to vector<8x1xf32>
    %cst_14 = arith.constant 3.125000e-02 : f32
    %19 = vector.broadcast %cst_14 : f32 to vector<8x1xf32>
    %20 = arith.mulf %18, %19 : vector<8x1xf32>
    %21 = arith.mulf %16, %16 : vector<8x128xf32>
    %cst_15 = arith.constant dense<0.000000e+00> : vector<8xf32>
    %22 = vector.multi_reduction <add>, %21, %cst_15 [1] : vector<8x128xf32> to vector<8xf32>
    %23 = vector.shape_cast %22 : vector<8xf32> to vector<8x1xf32>
    %cst_16 = arith.constant 3.125000e-02 : f32
    %24 = vector.broadcast %cst_16 : f32 to vector<8x1xf32>
    %25 = arith.mulf %23, %24 : vector<8x1xf32>
    %26 = arith.mulf %20, %20 : vector<8x1xf32>
    %27 = arith.subf %25, %26 : vector<8x1xf32>
    %28 = vector.broadcast %20 : vector<8x1xf32> to vector<8x128xf32>
    %29 = arith.subf %16, %28 : vector<8x128xf32>
    %cst_17 = arith.constant 9.99999974E-6 : f32
    %30 = vector.broadcast %cst_17 : f32 to vector<8x1xf32>
    %31 = arith.addf %27, %30 : vector<8x1xf32>
    %32 = math.rsqrt %31 : vector<8x1xf32>
    %33 = vector.broadcast %32 : vector<8x1xf32> to vector<8x128xf32>
    %34 = arith.mulf %29, %33 : vector<8x128xf32>
    %35 = vector.extract_strided_slice %9 {offsets = [1, 0], sizes = [1, 128], strides = [1, 1]} : vector<3x128xf32> to vector<1x128xf32>
    %36 = vector.broadcast %35 : vector<1x128xf32> to vector<8x128xf32>
    %37 = arith.mulf %34, %36 : vector<8x128xf32>
    %38 = vector.extract_strided_slice %9 {offsets = [2, 0], sizes = [1, 128], strides = [1, 1]} : vector<3x128xf32> to vector<1x128xf32>
    %39 = vector.broadcast %38 : vector<1x128xf32> to vector<8x128xf32>
    %40 = arith.addf %37, %39 : vector<8x128xf32>
    %c1 = arith.constant 1 : index
    %c0_18 = arith.constant 0 : index
    %c0_19 = arith.constant 0 : index
    %41 = vector.load %arg4[%c1, %c0_18, %c0_19] : memref<2x128x128xbf16, #tpu.memory_space<vmem>>, vector<1x128x128xbf16>
    %42 = vector.shape_cast %41 : vector<1x128x128xbf16> to vector<128x128xbf16>
    %c1_20 = arith.constant 1 : index
    %c0_21 = arith.constant 0 : index
    %c0_22 = arith.constant 0 : index
    %43 = vector.load %arg5[%c1_20, %c0_21, %c0_22] : memref<2x3x128xf32, #tpu.memory_space<vmem>>, vector<1x3x128xf32>
    %44 = vector.shape_cast %43 : vector<1x3x128xf32> to vector<3x128xf32>
    %45 = arith.truncf %40 : vector<8x128xf32> to vector<8x128xbf16>
    %cst_23 = arith.constant dense<0.000000e+00> : vector<8x128xf32>
    %46 = tpu.matmul %45, %42, %cst_23 {dimension_numbers = #tpu.dot_dimension_numbers<[1], [0], [0], [1], [0, 0, 1, 1], [], []>} : vector<8x128xbf16>, vector<128x128xbf16>, vector<8x128xf32> -> vector<8x128xf32>
    %47 = vector.extract_strided_slice %44 {offsets = [0, 0], sizes = [1, 128], strides = [1, 1]} : vector<3x128xf32> to vector<1x128xf32>
    %48 = vector.broadcast %47 : vector<1x128xf32> to vector<8x128xf32>
    %49 = arith.addf %46, %48 : vector<8x128xf32>
    %cst_24 = arith.constant 0.000000e+00 : f32
    %50 = vector.broadcast %cst_24 : f32 to vector<8x128xf32>
    %51 = arith.maximumf %49, %50 : vector<8x128xf32>
    %cst_25 = arith.constant dense<0.000000e+00> : vector<8xf32>
    %52 = vector.multi_reduction <add>, %51, %cst_25 [1] : vector<8x128xf32> to vector<8xf32>
    %53 = vector.shape_cast %52 : vector<8xf32> to vector<8x1xf32>
    %cst_26 = arith.constant 3.125000e-02 : f32
    %54 = vector.broadcast %cst_26 : f32 to vector<8x1xf32>
    %55 = arith.mulf %53, %54 : vector<8x1xf32>
    %56 = arith.mulf %51, %51 : vector<8x128xf32>
    %cst_27 = arith.constant dense<0.000000e+00> : vector<8xf32>
    %57 = vector.multi_reduction <add>, %56, %cst_27 [1] : vector<8x128xf32> to vector<8xf32>
    %58 = vector.shape_cast %57 : vector<8xf32> to vector<8x1xf32>
    %cst_28 = arith.constant 3.125000e-02 : f32
    %59 = vector.broadcast %cst_28 : f32 to vector<8x1xf32>
    %60 = arith.mulf %58, %59 : vector<8x1xf32>
    %61 = arith.mulf %55, %55 : vector<8x1xf32>
    %62 = arith.subf %60, %61 : vector<8x1xf32>
    %63 = vector.broadcast %55 : vector<8x1xf32> to vector<8x128xf32>
    %64 = arith.subf %51, %63 : vector<8x128xf32>
    %cst_29 = arith.constant 9.99999974E-6 : f32
    %65 = vector.broadcast %cst_29 : f32 to vector<8x1xf32>
    %66 = arith.addf %62, %65 : vector<8x1xf32>
    %67 = math.rsqrt %66 : vector<8x1xf32>
    %68 = vector.broadcast %67 : vector<8x1xf32> to vector<8x128xf32>
    %69 = arith.mulf %64, %68 : vector<8x128xf32>
    %70 = vector.extract_strided_slice %44 {offsets = [1, 0], sizes = [1, 128], strides = [1, 1]} : vector<3x128xf32> to vector<1x128xf32>
    %71 = vector.broadcast %70 : vector<1x128xf32> to vector<8x128xf32>
    %72 = arith.mulf %69, %71 : vector<8x128xf32>
    %73 = vector.extract_strided_slice %44 {offsets = [2, 0], sizes = [1, 128], strides = [1, 1]} : vector<3x128xf32> to vector<1x128xf32>
    %74 = vector.broadcast %73 : vector<1x128xf32> to vector<8x128xf32>
    %75 = arith.addf %72, %74 : vector<8x128xf32>
    %76 = arith.truncf %75 : vector<8x128xf32> to vector<8x128xbf16>
    %c0_30 = arith.constant 0 : index
    %c0_31 = arith.constant 0 : index
    %77 = vector.load %arg6[%c0_30, %c0_31] : memref<128x128xbf16, #tpu.memory_space<vmem>>, vector<128x128xbf16>
    %cst_32 = arith.constant dense<0.000000e+00> : vector<8x128xf32>
    %78 = tpu.matmul %76, %77, %cst_32 {dimension_numbers = #tpu.dot_dimension_numbers<[1], [0], [0], [1], [0, 0, 1, 1], [], []>} : vector<8x128xbf16>, vector<128x128xbf16>, vector<8x128xf32> -> vector<8x128xf32>
    %c1_33 = arith.constant 1 : index
    %c0_34 = arith.constant 0 : index
    %79 = vector.load %arg3[%c1_33, %c0_34] : memref<2x128xf32, #tpu.memory_space<vmem>>, vector<1x128xf32>
    %80 = vector.broadcast %79 : vector<1x128xf32> to vector<8x128xf32>
    %81 = arith.addf %78, %80 : vector<8x128xf32>
    %c0_35 = arith.constant 0 : index
    %c0_36 = arith.constant 0 : index
    %82 = vector.load %arg7[%c0_35, %c0_36] : memref<8x128xf32, #tpu.memory_space<vmem>>, vector<8x128xf32>
    tpu.vector_store %arg7[%c0_35, %c0_36], %81 {strides = array<i32>} : memref<8x128xf32, #tpu.memory_space<vmem>>, vector<8x128xf32>,
    return
  }
  func.func @transform_0(%arg0: i32) -> (i32, i32) {
    %c0_i32 = arith.constant 0 : i32
    %c0_i32_0 = arith.constant 0 : i32
    return %arg0, %c0_i32 : i32, i32
  }
  func.func @transform_1(%arg0: i32) -> (i32, i32) {
    %c0_i32 = arith.constant 0 : i32
    %c0_i32_0 = arith.constant 0 : i32
    %c0_i32_1 = arith.constant 0 : i32
    return %c0_i32, %c0_i32_0 : i32, i32
  }
  func.func @transform_2(%arg0: i32) -> (i32, i32) {
    %c0_i32 = arith.constant 0 : i32
    %c0_i32_0 = arith.constant 0 : i32
    %c0_i32_1 = arith.constant 0 : i32
    return %c0_i32, %c0_i32_0 : i32, i32
  }
  func.func @transform_3(%arg0: i32) -> (i32, i32, i32) {
    %c0_i32 = arith.constant 0 : i32
    %c0_i32_0 = arith.constant 0 : i32
    %c0_i32_1 = arith.constant 0 : i32
    %c0_i32_2 = arith.constant 0 : i32
    return %c0_i32, %c0_i32_0, %c0_i32_1 : i32, i32, i32
  }
  func.func @transform_4(%arg0: i32) -> (i32, i32, i32) {
    %c0_i32 = arith.constant 0 : i32
    %c0_i32_0 = arith.constant 0 : i32
    %c0_i32_1 = arith.constant 0 : i32
    %c0_i32_2 = arith.constant 0 : i32
    return %c0_i32, %c0_i32_0, %c0_i32_1 : i32, i32, i32
  }
  func.func @transform_5(%arg0: i32) -> (i32, i32) {
    %c0_i32 = arith.constant 0 : i32
    %c0_i32_0 = arith.constant 0 : i32
    %c0_i32_1 = arith.constant 0 : i32
    return %c0_i32, %c0_i32_0 : i32, i32
  }
  func.func @transform_6(%arg0: i32) -> (i32, i32) {
    %c0_i32 = arith.constant 0 : i32
    %c0_i32_0 = arith.constant 0 : i32
    return %arg0, %c0_i32 : i32, i32
  }
}

</mosaic_0001>

<llo_original>
// kernel: tpu_custom_call.1
$region0: #{tpu_custom_call.1}
  #allocation0 [shape = 'u32[]', space=smem, size = 0x4, offset = 0x4, fixed_abs, tag = 'smem constant byte address 0x4 - core index']
  #allocation1 [shape = 'u32[144,128]{1,0:T(1,128)}', space=vmem, size = 0x12000, scoped, tag = 'internal scratch']
  %s0 = inlined_call_operand.hbm [shape: bf16[16,128], index: 0, kind: input, shape index: {}]
  %s1 = inlined_call_operand.hbm [shape: bf16[128,128], index: 1, kind: input, shape index: {}]
  %s2 = inlined_call_operand.hbm [shape: f32[2,128], index: 2, kind: input, shape index: {}]
  %s3 = inlined_call_operand.hbm [shape: bf16[2,128,128], index: 3, kind: input, shape index: {}]
  %s4 = inlined_call_operand.hbm [shape: f32[2,3,128], index: 4, kind: input, shape index: {}]
  %s5 = inlined_call_operand.hbm [shape: bf16[128,128], index: 5, kind: input, shape index: {}]
  %s6 = inlined_call_operand.hbm [shape: f32[16,128], index: 6, kind: output, shape index: {}]
  %s7 = sld [smem:[#allocation0]]
  $region81: #{tpu_custom_call.1} parent=0
    _
  %s9 = ssub.s32 1, %s7
  %s10 = scalar_select 0, %s9, %s7
  $region1: #{tpu_custom_call.1} parent=0
    #allocation2 [shape = 'u8[4096]{0}', space=vmem, size = 0x1000, scoped, tag = 'input window, operand 0']
    #allocation3 [shape = 's32[2]{0}', space=sflag, size = 0x8, scoped, tag = 'scoped memory for tpu_custom_call.1']
    #allocation4 [shape = 's32[2]{0}', space=sflag, size = 0x8, scoped, tag = 'scoped memory for tpu_custom_call.1']
    #allocation5 [shape = 'u8[32768]{0}', space=vmem, size = 0x8000, scoped, tag = 'input window, operand 1, single buffered']
    #allocation6 [shape = 's32[1]{0}', space=sflag, size = 0x4, scoped, tag = 'scoped memory for tpu_custom_call.1']
    #allocation7 [shape = 'u8[1024]{0}', space=vmem, size = 0x400, scoped, tag = 'input window, operand 2, single buffered']
    #allocation8 [shape = 'u8[65536]{0}', space=vmem, size = 0x10000, scoped, tag = 'input window, operand 3, single buffered']
    #allocation9 [shape = 's32[1]{0}', space=sflag, size = 0x4, scoped, tag = 'scoped memory for tpu_custom_call.1']
    #allocation10 [shape = 'u8[4096]{0}', space=vmem, size = 0x1000, scoped, tag = 'input window, operand 4, single buffered']
    #allocation11 [shape = 'u8[32768]{0}', space=vmem, size = 0x8000, scoped, tag = 'input window, operand 5, single buffered']
    #allocation12 [shape = 's32[1]{0}', space=sflag, size = 0x4, scoped, tag = 'scoped memory for tpu_custom_call.1']
    #allocation13 [shape = 'u8[8192]{0}', space=vmem, size = 0x2000, scoped, tag = 'output window, operand 0']
    %11 = vsyncpa [#allocation3], 0
    %s12 = scalar_lea.sflag [#allocation3], 1
    %13 = vsyncpa %s12, 0
    %14 = vsyncpa [#allocation6], 0
    %15 = vsyncpa [#allocation9], 0
    %16 = vsyncpa [#allocation12], 0
    %17 = vsyncpa [#allocation4], 0
    %s18 = scalar_lea.sflag [#allocation4], 1
    %19 = vsyncpa %s18, 0
    loop: start=0, step=1, limit=4
    $region2: #{tpu_custom_call.1} parent=1 // loop_pre_header
      _
    $region3: #{tpu_custom_call.1} parent=1 // loop_header
      %s21 = sphi 0, %s25
      %p22 = scmp.ge.s32.totalorder %s21, 4
      %s31 = sphi 0, %s33
      %s34 = sphi 0, %s31
      %s35 = sphi 0, %s34
      %s51 = sphi 0, %s35
      %s55 = sphi 0, %s55
      %s57 = sphi 0, %s55
      %s58 = sphi 0, %s57
      %s72 = sphi 0, %s58
      %s76 = sphi 0, %s76
      %s78 = sphi 0, %s76
      %s79 = sphi 0, %s78
      %s93 = sphi 0, %s79
      %s97 = sphi 0, %s97
      %s99 = sphi 0, %s97
      %s100 = sphi 0, %s99
      %s114 = sphi 0, %s100
      %s118 = sphi 0, %s118
      %s120 = sphi 0, %s118
      %s121 = sphi 0, %s120
      %s135 = sphi 0, %s121
      %s139 = sphi 0, %s139
      %s141 = sphi 0, %s139
      %s142 = sphi 0, %s141
      %s156 = sphi 0, %s142
      %s162 = sphi 0, %s164
      %s165 = sphi 0, %s162
      %s166 = sphi 0, %s165
      %s182 = sphi 0, %s166
    $region4: #{tpu_custom_call.1} parent=1 // loop_header_branch
      %24 = sbr.rel (%p22) target = $region8
    $region5: #{tpu_custom_call.1} parent=1 // loop_body
      %s26 = ssub.s32 %s21, 1
      %s27 = ssub.s32 %s21, 2
      %s28 = sadd.s32 %s21, 1
      %s29 = ssub.s32 %s21, %s28
      %p30 = scmp.eq.s32.totalorder %s29, 0
      %s32 = sadd.s32 %s31, 1
      %s33 = scalar_select %p30, %s31, %s32
      %p36 = pneg %p30
      %p37 = scmp.eq.s32.totalorder %s21, 1
      %p38 = por %p36, %p37
      %p39 = scmp.ne.s32.totalorder %s31, %s34
      %p40 = scmp.eq.s32.totalorder %s21, 0
      %p41 = por %p39, %p40
      %p42 = scmp.ne.s32.totalorder %s31, %s34
      %p43 = scmp.eq.s32.totalorder %s26, 1
      %p44 = por %p42, %p43
      %p45 = scmp.ne.s32.totalorder %s34, %s35
      %p46 = scmp.eq.s32.totalorder %s26, 0
      %p47 = por %p45, %p46
      %p48 = scmp.ne.s32.totalorder %s34, %s35
      %p49 = scmp.eq.s32.totalorder %s27, 1
      %p50 = por %p48, %p49
      %p52 = scmp.ne.s32.totalorder %s35, %s51
      %p53 = scmp.eq.s32.totalorder %s27, 0
      %p54 = por %p52, %p53
      %s56 = sadd.s32 %s55, 1
      %p59 = scmp.eq.s32.totalorder %s21, 1
      %p60 = scmp.ne.s32.totalorder %s55, %s57
      %p61 = scmp.eq.s32.totalorder %s21, 0
      %p62 = por %p60, %p61
      %p63 = scmp.ne.s32.totalorder %s55, %s57
      %p64 = scmp.eq.s32.totalorder %s26, 1
      %p65 = por %p63, %p64
      %p66 = scmp.ne.s32.totalorder %s57, %s58
      %p67 = scmp.eq.s32.totalorder %s26, 0
      %p68 = por %p66, %p67
      %p69 = scmp.ne.s32.totalorder %s57, %s58
      %p70 = scmp.eq.s32.totalorder %s27, 1
      %p71 = por %p69, %p70
      %p73 = scmp.ne.s32.totalorder %s58, %s72
      %p74 = scmp.eq.s32.totalorder %s27, 0
      %p75 = por %p73, %p74
      %s77 = sadd.s32 %s76, 1
      %p80 = scmp.eq.s32.totalorder %s21, 1
      %p81 = scmp.ne.s32.totalorder %s76, %s78
      %p82 = scmp.eq.s32.totalorder %s21, 0
      %p83 = por %p81, %p82
      %p84 = scmp.ne.s32.totalorder %s76, %s78
      %p85 = scmp.eq.s32.totalorder %s26, 1
      %p86 = por %p84, %p85
      %p87 = scmp.ne.s32.totalorder %s78, %s79
      %p88 = scmp.eq.s32.totalorder %s26, 0
      %p89 = por %p87, %p88
      %p90 = scmp.ne.s32.totalorder %s78, %s79
      %p91 = scmp.eq.s32.totalorder %s27, 1
      %p92 = por %p90, %p91
      %p94 = scmp.ne.s32.totalorder %s79, %s93
      %p95 = scmp.eq.s32.totalorder %s27, 0
      %p96 = por %p94, %p95
      %s98 = sadd.s32 %s97, 1
      %p101 = scmp.eq.s32.totalorder %s21, 1
      %p102 = scmp.ne.s32.totalorder %s97, %s99
      %p103 = scmp.eq.s32.totalorder %s21, 0
      %p104 = por %p102, %p103
      %p105 = scmp.ne.s32.totalorder %s97, %s99
      %p106 = scmp.eq.s32.totalorder %s26, 1
      %p107 = por %p105, %p106
      %p108 = scmp.ne.s32.totalorder %s99, %s100
      %p109 = scmp.eq.s32.totalorder %s26, 0
      %p110 = por %p108, %p109
      %p111 = scmp.ne.s32.totalorder %s99, %s100
      %p112 = scmp.eq.s32.totalorder %s27, 1
      %p113 = por %p111, %p112
      %p115 = scmp.ne.s32.totalorder %s100, %s114
      %p116 = scmp.eq.s32.totalorder %s27, 0
      %p117 = por %p115, %p116
      %s119 = sadd.s32 %s118, 1
      %p122 = scmp.eq.s32.totalorder %s21, 1
      %p123 = scmp.ne.s32.totalorder %s118, %s120
      %p124 = scmp.eq.s32.totalorder %s21, 0
      %p125 = por %p123, %p124
      %p126 = scmp.ne.s32.totalorder %s118, %s120
      %p127 = scmp.eq.s32.totalorder %s26, 1
      %p128 = por %p126, %p127
      %p129 = scmp.ne.s32.totalorder %s120, %s121
      %p130 = scmp.eq.s32.totalorder %s26, 0
      %p131 = por %p129, %p130
      %p132 = scmp.ne.s32.totalorder %s120, %s121
      %p133 = scmp.eq.s32.totalorder %s27, 1
      %p134 = por %p132, %p133
      %p136 = scmp.ne.s32.totalorder %s121, %s135
      %p137 = scmp.eq.s32.totalorder %s27, 0
      %p138 = por %p136, %p137
      %s140 = sadd.s32 %s139, 1
      %p143 = scmp.eq.s32.totalorder %s21, 1
      %p144 = scmp.ne.s32.totalorder %s139, %s141
      %p145 = scmp.eq.s32.totalorder %s21, 0
      %p146 = por %p144, %p145
      %p147 = scmp.ne.s32.totalorder %s139, %s141
      %p148 = scmp.eq.s32.totalorder %s26, 1
      %p149 = por %p147, %p148
      %p150 = scmp.ne.s32.totalorder %s141, %s142
      %p151 = scmp.eq.s32.totalorder %s26, 0
      %p152 = por %p150, %p151
      %p153 = scmp.ne.s32.totalorder %s141, %s142
      %p154 = scmp.eq.s32.totalorder %s27, 1
      %p155 = por %p153, %p154
      %p157 = scmp.ne.s32.totalorder %s142, %s156
      %p158 = scmp.eq.s32.totalorder %s27, 0
      %p159 = por %p157, %p158
      %s160 = ssub.s32 %s21, %s28
      %p161 = scmp.eq.s32.totalorder %s160, 0
      %s163 = sadd.s32 %s162, 1
      %s164 = scalar_select %p161, %s162, %s163
      %p167 = pneg %p161
      %p168 = scmp.eq.s32.totalorder %s21, 1
      %p169 = por %p167, %p168
      %p170 = scmp.ne.s32.totalorder %s162, %s165
      %p171 = scmp.eq.s32.totalorder %s21, 0
      %p172 = por %p170, %p171
      %p173 = scmp.ne.s32.totalorder %s162, %s165
      %p174 = scmp.eq.s32.totalorder %s26, 1
      %p175 = por %p173, %p174
      %p176 = scmp.ne.s32.totalorder %s165, %s166
      %p177 = scmp.eq.s32.totalorder %s26, 0
      %p178 = por %p176, %p177
      %p179 = scmp.ne.s32.totalorder %s165, %s166
      %p180 = scmp.eq.s32.totalorder %s27, 1
      %p181 = por %p179, %p180
      %p183 = scmp.ne.s32.totalorder %s166, %s182
      %p184 = scmp.eq.s32.totalorder %s27, 0
      %p185 = por %p183, %p184
      %p186 = scmp.le.s32.totalorder 1, %s21
      %p187 = scmp.lt.s32.totalorder %s21, 3
      %p188 = pnand %p186, %p187
      %p189 = pneg %p188
      // Predicated region
      $region9: #{tpu_custom_call.1} parent=5 // pred_check
        _
      $region10: #{tpu_custom_call.1} parent=5 // pred_check_branch
        %191 = sbr.rel (%p188) target = $region12
      $region11: #{tpu_custom_call.1} parent=5 // pred_region
        %s192 = ssub.s32 %s21, 1
        // Predicated region
        $region13: #{tpu_custom_call.1} parent=11 // pred_check
          %p193 = pneg %p68
        $region14: #{tpu_custom_call.1} parent=11 // pred_check_branch
          %195 = sbr.rel (%p193) target = $region16
        $region15: #{tpu_custom_call.1} parent=11 // pred_region
          %s197 = ssub.s32 1024, 1024
          %198 = vsyncadd [#allocation6], %s197
          %s199 = sshll.u32 [#allocation5], 4
          %s200 = int_to_ptr.vmem [resolvable:$true] %s199
          %205 = dma.hbm_to_vmem [thread:$0]  %s1, 1024, %s200, [#allocation6], 64, 64, 4
        $region16: #{tpu_custom_call.1} parent=11 // pred_fallthru
          _
        // Predicated region
        $region17: #{tpu_custom_call.1} parent=11 // pred_check
          %p206 = pneg %p89
        $region18: #{tpu_custom_call.1} parent=11 // pred_check_branch
          %208 = sbr.rel (%p206) target = $region20
        $region19: #{tpu_custom_call.1} parent=11 // pred_region
          %s210 = ssub.s32 32, 32
          %211 = vsyncadd [#allocation6], %s210
          %s213 = sshll.u32 [#allocation7], 4
          %s214 = int_to_ptr.vmem [resolvable:$true] %s213
          %216 = dma.hbm_to_vmem [thread:$0]  %s2, 32, %s214, [#allocation6]
        $region20: #{tpu_custom_call.1} parent=11 // pred_fallthru
          _
        // Predicated region
        $region21: #{tpu_custom_call.1} parent=11 // pred_check
          %p217 = pneg %p110
        $region22: #{tpu_custom_call.1} parent=11 // pred_check_branch
          %219 = sbr.rel (%p217) target = $region24
        $region23: #{tpu_custom_call.1} parent=11 // pred_region
          %s221 = ssub.s32 2048, 2048
          %222 = vsyncadd [#allocation9], %s221
          %s223 = sshll.u32 [#allocation8], 4
          %s224 = int_to_ptr.vmem [resolvable:$true] %s223
          %229 = dma.hbm_to_vmem [thread:$0]  %s3, 2048, %s224, [#allocation9], 64, 64, 4
        $region24: #{tpu_custom_call.1} parent=11 // pred_fallthru
          _
        // Predicated region
        $region25: #{tpu_custom_call.1} parent=11 // pred_check
          %p230 = pneg %p131
        $region26: #{tpu_custom_call.1} parent=11 // pred_check_branch
          %232 = sbr.rel (%p230) target = $region28
        $region27: #{tpu_custom_call.1} parent=11 // pred_region
          %s234 = ssub.s32 128, 128
          %235 = vsyncadd [#allocation9], %s234
          %s236 = sshll.u32 [#allocation10], 4
          %s237 = int_to_ptr.vmem [resolvable:$true] %s236
          %242 = dma.hbm_to_vmem [thread:$0]  %s4, 128, %s237, [#allocation9], 64, 64, 4
        $region28: #{tpu_custom_call.1} parent=11 // pred_fallthru
          _
        // Predicated region
        $region29: #{tpu_custom_call.1} parent=11 // pred_check
          %p243 = pneg %p152
        $region30: #{tpu_custom_call.1} parent=11 // pred_check_branch
          %245 = sbr.rel (%p243) target = $region32
        $region31: #{tpu_custom_call.1} parent=11 // pred_region
          %s247 = ssub.s32 1024, 1024
          %248 = vsyncadd [#allocation12], %s247
          %s249 = sshll.u32 [#allocation11], 4
          %s250 = int_to_ptr.vmem [resolvable:$true] %s249
          %255 = dma.hbm_to_vmem [thread:$0]  %s5, 1024, %s250, [#allocation12], 64, 64, 4
        $region32: #{tpu_custom_call.1} parent=11 // pred_fallthru
          _
      $region12: #{tpu_custom_call.1} parent=5 // pred_fallthru
        _
      %p256 = scmp.lt.s32.totalorder %s21, 2
      // Predicated region
      $region33: #{tpu_custom_call.1} parent=5 // pred_check
        %p257 = pneg %p256
      $region34: #{tpu_custom_call.1} parent=5 // pred_check_branch
        %259 = sbr.rel (%p257) target = $region36
      $region35: #{tpu_custom_call.1} parent=5 // pred_region
        // Predicated region
        $region37: #{tpu_custom_call.1} parent=35 // pred_check
          %p260 = pneg %p41
        $region38: #{tpu_custom_call.1} parent=35 // pred_check_branch
          %262 = sbr.rel (%p260) target = $region40
        $region39: #{tpu_custom_call.1} parent=35 // pred_region
          %s263 = sand.u32 %s31, 1
          %s264 = scalar_lea.sflag [#allocation3], %s263
          %s265 = sand.u32 %s31, 1
          %s266 = smul.addr %s265, 4
          %s267 = scalar_lea.vmem [#allocation2], %s266
          %s269 = ssub.s32 64, 64
          %270 = vsyncadd %s264, %s269
          %s271 = smul.addr %s21, 64
          %s272 = scalar_lea.hbm %s0, %s271
          %s274 = sshll.u32 %s267, 4
          %s275 = int_to_ptr.vmem [resolvable:$true] %s274
          %277 = dma.hbm_to_vmem [thread:$0]  %s272, 64, %s275, %s264
        $region40: #{tpu_custom_call.1} parent=35 // pred_fallthru
          _
      $region36: #{tpu_custom_call.1} parent=5 // pred_fallthru
        _
      %p278 = scmp.le.s32.totalorder 1, %s21
      %p279 = scmp.lt.s32.totalorder %s21, 3
      %p280 = pnand %p278, %p279
      %p281 = pneg %p280
      // Predicated region
      $region41: #{tpu_custom_call.1} parent=5 // pred_check
        _
      $region42: #{tpu_custom_call.1} parent=5 // pred_check_branch
        %283 = sbr.rel (%p280) target = $region44
      $region43: #{tpu_custom_call.1} parent=5 // pred_region
        %s284 = ssub.s32 %s21, 1
        %s285 = sand.u32 %s34, 1
        %s286 = scalar_lea.sflag [#allocation3], %s285
        %s287 = sand.u32 %s34, 1
        %s288 = smul.addr %s287, 4
        %s289 = scalar_lea.vmem [#allocation2], %s288
        // Predicated region
        $region45: #{tpu_custom_call.1} parent=43 // pred_check
          %p290 = pneg %p47
        $region46: #{tpu_custom_call.1} parent=43 // pred_check_branch
          %292 = sbr.rel (%p290) target = $region48
        $region47: #{tpu_custom_call.1} parent=43 // pred_region
          %293 = dma.done %s286, 64
        $region48: #{tpu_custom_call.1} parent=43 // pred_fallthru
          _
        // Predicated region
        $region49: #{tpu_custom_call.1} parent=43 // pred_check
          %p294 = pneg %p68
        $region50: #{tpu_custom_call.1} parent=43 // pred_check_branch
          %296 = sbr.rel (%p294) target = $region52
        $region51: #{tpu_custom_call.1} parent=43 // pred_region
          %297 = dma.done [#allocation6], 1024
        $region52: #{tpu_custom_call.1} parent=43 // pred_fallthru
          _
        // Predicated region
        $region53: #{tpu_custom_call.1} parent=43 // pred_check
          %p298 = pneg %p89
        $region54: #{tpu_custom_call.1} parent=43 // pred_check_branch
          %300 = sbr.rel (%p298) target = $region56
        $region55: #{tpu_custom_call.1} parent=43 // pred_region
          %301 = dma.done [#allocation6], 32
        $region56: #{tpu_custom_call.1} parent=43 // pred_fallthru
          _
        // Predicated region
        $region57: #{tpu_custom_call.1} parent=43 // pred_check
          %p302 = pneg %p110
        $region58: #{tpu_custom_call.1} parent=43 // pred_check_branch
          %304 = sbr.rel (%p302) target = $region60
        $region59: #{tpu_custom_call.1} parent=43 // pred_region
          %305 = dma.done [#allocation9], 2048
        $region60: #{tpu_custom_call.1} parent=43 // pred_fallthru
          _
        // Predicated region
        $region61: #{tpu_custom_call.1} parent=43 // pred_check
          %p306 = pneg %p131
        $region62: #{tpu_custom_call.1} parent=43 // pred_check_branch
          %308 = sbr.rel (%p306) target = $region64
        $region63: #{tpu_custom_call.1} parent=43 // pred_region
          %309 = dma.done [#allocation9], 128
        $region64: #{tpu_custom_call.1} parent=43 // pred_fallthru
          _
        // Predicated region
        $region65: #{tpu_custom_call.1} parent=43 // pred_check
          %p310 = pneg %p152
        $region66: #{tpu_custom_call.1} parent=43 // pred_check_branch
          %312 = sbr.rel (%p310) target = $region68
        $region67: #{tpu_custom_call.1} parent=43 // pred_region
          %313 = dma.done [#allocation12], 1024
        $region68: #{tpu_custom_call.1} parent=43 // pred_fallthru
          _
        %s314 = sand.u32 %s34, 1
        %s315 = scalar_lea.sflag [#allocation3], %s314
        %s316 = sand.u32 %s34, 1
        %s317 = smul.addr %s316, 4
        %s318 = scalar_lea.vmem [#allocation2], %s317
        %p319 = pneg %p47
        %p320 = pneg %p44
        %p321 = pneg %p68
        %p322 = pneg %p65
        %p323 = pneg %p89
        %p324 = pneg %p86
        %p325 = pneg %p110
        %p326 = pneg %p107
        %p327 = pneg %p131
        %p328 = pneg %p128
        %p329 = pneg %p152
        %p330 = pneg %p149
        %p331 = pneg %p178
        %p332 = pneg %p175
        %s333 = sand.u32 %s165, 1
        %s334 = scalar_lea.sflag [#allocation4], %s333
        %s335 = sand.u32 %s165, 1
        %s336 = smul.addr %s335, 8
        %s337 = scalar_lea.vmem [#allocation13], %s336
        %v339 = vld [vmem:[%s289] sm:$0xf]
        %v340 = vld [vmem:[#allocation5] sm:$0xf]
        %v341 = vld [vmem:[#allocation5 + $0x4] sm:$0xf]
        %v342 = vld [vmem:[#allocation5 + $0x8] sm:$0xf]
        %v343 = vld [vmem:[#allocation5 + $0xc] sm:$0xf]
        %v344 = vld [vmem:[#allocation5 + $0x10] sm:$0xf]
        %v345 = vld [vmem:[#allocation5 + $0x14] sm:$0xf]
        %v346 = vld [vmem:[#allocation5 + $0x18] sm:$0xf]
        %v347 = vld [vmem:[#allocation5 + $0x1c] sm:$0xf]
        %v348 = vld [vmem:[#allocation5 + $0x20] sm:$0xf]
        %v349 = vld [vmem:[#allocation5 + $0x24] sm:$0xf]
        %v350 = vld [vmem:[#allocation5 + $0x28] sm:$0xf]
        %v351 = vld [vmem:[#allocation5 + $0x2c] sm:$0xf]
        %v352 = vld [vmem:[#allocation5 + $0x30] sm:$0xf]
        %v353 = vld [vmem:[#allocation5 + $0x34] sm:$0xf]
        %v354 = vld [vmem:[#allocation5 + $0x38] sm:$0xf]
        %v355 = vld [vmem:[#allocation5 + $0x3c] sm:$0xf]
        %v356 = vld [vmem:[#allocation7] sm:$0x1]
        %v357 = vlaneseq
        %v358 = vshrl.u32 %v357, 7
        %v359 = vsub.s32 0, %v358
        %v360 = vrot.slane %v356, %v359
        %v377 = vunpack.c.l.b16 %v340
        %v378 = vunpack.c.l.b16 %v341
        %v379 = vunpack.c.l.b16 %v342
        %v380 = vunpack.c.l.b16 %v343
        %v381 = vunpack.c.l.b16 %v344
        %v382 = vunpack.c.l.b16 %v345
        %v383 = vunpack.c.l.b16 %v346
        %v384 = vunpack.c.l.b16 %v347
        %v385 = vunpack.c.l.b16 %v348
        %v386 = vunpack.c.l.b16 %v349
        %v387 = vunpack.c.l.b16 %v350
        %v388 = vunpack.c.l.b16 %v351
        %v389 = vunpack.c.l.b16 %v352
        %v390 = vunpack.c.l.b16 %v353
        %v391 = vunpack.c.l.b16 %v354
        %v392 = vunpack.c.l.b16 %v355
        %v393 = vpack.c.b16 %v378, %v377
        %v394 = vpack.c.b16 %v380, %v379
        %v395 = vpack.c.b16 %v382, %v381
        %v396 = vpack.c.b16 %v384, %v383
        %v397 = vpack.c.b16 %v386, %v385
        %v398 = vpack.c.b16 %v388, %v387
        %v399 = vpack.c.b16 %v390, %v389
        %v400 = vpack.c.b16 %v392, %v391
        %409 = vmatprep.subr.bf16.mxu0 0
        %410 = vmatpush1.bf16.msra.mxu0 %v393
        %411 = vmatprep.subr.bf16.mxu0 0
        %412 = vmatpush1.bf16.msra.mxu0 %v394
        %413 = vmatprep.subr.bf16.mxu0 0
        %414 = vmatpush1.bf16.msra.mxu0 %v395
        %415 = vmatprep.subr.bf16.mxu0 0
        %416 = vmatpush1.bf16.msra.mxu0 %v396
        %417 = vmatprep.subr.bf16.mxu0 0
        %418 = vmatpush1.bf16.msra.mxu0 %v397
        %419 = vmatprep.subr.bf16.mxu0 0
        %420 = vmatpush1.bf16.msra.mxu0 %v398
        %421 = vmatprep.subr.bf16.mxu0 0
        %422 = vmatpush1.bf16.msra.mxu0 %v399
        %423 = vmatprep.subr.bf16.mxu0 0
        %424 = vmatpush1.bf16.msra.mxu0 %v400
        %425 = vmatprep.subr.bf16.mxu0 0
        %426 = vmatpush1.bf16.msra.mxu0 0
        %427 = vmatprep.subr.bf16.mxu0 0
        %428 = vmatpush1.bf16.msra.mxu0 0
        %429 = vmatprep.subr.bf16.mxu0 0
        %430 = vmatpush1.bf16.msra.mxu0 0
        %431 = vmatprep.subr.bf16.mxu0 0
        %432 = vmatpush1.bf16.msra.mxu0 0
        %433 = vmatprep.subr.bf16.mxu0 0
        %434 = vmatpush1.bf16.msra.mxu0 0
        %435 = vmatprep.subr.bf16.mxu0 0
        %436 = vmatpush1.bf16.msra.mxu0 0
        %437 = vmatprep.subr.bf16.mxu0 0
        %438 = vmatpush1.bf16.msra.mxu0 0
        %439 = vmatprep.subr.bf16.mxu0 0
        %440 = vmatpush1.bf16.msra.mxu0 0
        %441 = vmatprep.mubr.bf16.mxu0 0
        %442 = vmatmul.mubr.bf16.gmra.mrb[0].mxu0 %v339
        %v443 = vpop.f32.mrb[0].mxu0
        %v444 = vadd.f32 %v360, %v443
        %v445 = vpop.f32.mrb[0].mxu0
        %v446 = vpop.f32.mrb[0].mxu0
        %v447 = vpop.f32.mrb[0].mxu0
        %448 = vdwg.mxu0
        %v449 = vld [vmem:[#allocation8] sm:$0xf]
        %v450 = vld [vmem:[#allocation8 + $0x4] sm:$0xf]
        %v451 = vld [vmem:[#allocation8 + $0x8] sm:$0xf]
        %v452 = vld [vmem:[#allocation8 + $0xc] sm:$0xf]
        %v453 = vld [vmem:[#allocation8 + $0x10] sm:$0xf]
        %v454 = vld [vmem:[#allocation8 + $0x14] sm:$0xf]
        %v455 = vld [vmem:[#allocation8 + $0x18] sm:$0xf]
        %v456 = vld [vmem:[#allocation8 + $0x1c] sm:$0xf]
        %v457 = vld [vmem:[#allocation8 + $0x20] sm:$0xf]
        %v458 = vld [vmem:[#allocation8 + $0x24] sm:$0xf]
        %v459 = vld [vmem:[#allocation8 + $0x28] sm:$0xf]
        %v460 = vld [vmem:[#allocation8 + $0x2c] sm:$0xf]
        %v461 = vld [vmem:[#allocation8 + $0x30] sm:$0xf]
        %v462 = vld [vmem:[#allocation8 + $0x34] sm:$0xf]
        %v463 = vld [vmem:[#allocation8 + $0x38] sm:$0xf]
        %v464 = vld [vmem:[#allocation8 + $0x3c] sm:$0xf]
        %v465 = vld [vmem:[#allocation10] sm:$0x7]
        %v466 = vpack.c.bf16 %v444, %v444
        %v467 = vlaneseq
        %v468 = vshrl.u32 %v467, 7
        %v469 = vsub.s32 0, %v468
        %v470 = vrot.slane %v465, %v469
        %v487 = vunpack.c.l.b16 %v449
        %v488 = vunpack.c.l.b16 %v450
        %v489 = vunpack.c.l.b16 %v451
        %v490 = vunpack.c.l.b16 %v452
        %v491 = vunpack.c.l.b16 %v453
        %v492 = vunpack.c.l.b16 %v454
        %v493 = vunpack.c.l.b16 %v455
        %v494 = vunpack.c.l.b16 %v456
        %v495 = vunpack.c.l.b16 %v457
        %v496 = vunpack.c.l.b16 %v458
        %v497 = vunpack.c.l.b16 %v459
        %v498 = vunpack.c.l.b16 %v460
        %v499 = vunpack.c.l.b16 %v461
        %v500 = vunpack.c.l.b16 %v462
        %v501 = vunpack.c.l.b16 %v463
        %v502 = vunpack.c.l.b16 %v464
        %v503 = vpack.c.b16 %v488, %v487
        %v504 = vpack.c.b16 %v490, %v489
        %v505 = vpack.c.b16 %v492, %v491
        %v506 = vpack.c.b16 %v494, %v493
        %v507 = vpack.c.b16 %v496, %v495
        %v508 = vpack.c.b16 %v498, %v497
        %v509 = vpack.c.b16 %v500, %v499
        %v510 = vpack.c.b16 %v502, %v501
        %519 = vmatprep.subr.bf16.mxu0 0
        %520 = vmatpush1.bf16.msra.mxu0 %v503
        %521 = vmatprep.subr.bf16.mxu0 0
        %522 = vmatpush1.bf16.msra.mxu0 %v504
        %523 = vmatprep.subr.bf16.mxu0 0
        %524 = vmatpush1.bf16.msra.mxu0 %v505
        %525 = vmatprep.subr.bf16.mxu0 0
        %526 = vmatpush1.bf16.msra.mxu0 %v506
        %527 = vmatprep.subr.bf16.mxu0 0
        %528 = vmatpush1.bf16.msra.mxu0 %v507
        %529 = vmatprep.subr.bf16.mxu0 0
        %530 = vmatpush1.bf16.msra.mxu0 %v508
        %531 = vmatprep.subr.bf16.mxu0 0
        %532 = vmatpush1.bf16.msra.mxu0 %v509
        %533 = vmatprep.subr.bf16.mxu0 0
        %534 = vmatpush1.bf16.msra.mxu0 %v510
        %535 = vmatprep.subr.bf16.mxu0 0
        %536 = vmatpush1.bf16.msra.mxu0 0
        %537 = vmatprep.subr.bf16.mxu0 0
        %538 = vmatpush1.bf16.msra.mxu0 0
        %539 = vmatprep.subr.bf16.mxu0 0
        %540 = vmatpush1.bf16.msra.mxu0 0
        %541 = vmatprep.subr.bf16.mxu0 0
        %542 = vmatpush1.bf16.msra.mxu0 0
        %543 = vmatprep.subr.bf16.mxu0 0
        %544 = vmatpush1.bf16.msra.mxu0 0
        %545 = vmatprep.subr.bf16.mxu0 0
        %546 = vmatpush1.bf16.msra.mxu0 0
        %547 = vmatprep.subr.bf16.mxu0 0
        %548 = vmatpush1.bf16.msra.mxu0 0
        %549 = vmatprep.subr.bf16.mxu0 0
        %550 = vmatpush1.bf16.msra.mxu0 0
        %551 = vmatprep.mubr.bf16.mxu0 0
        %552 = vmatmul.mubr.bf16.gmra.mrb[0].mxu0 %v466
        %v553 = vpop.f32.mrb[0].mxu0
        %v554 = vadd.f32 %v470, %v553
        %v555 = vpop.f32.mrb[0].mxu0
        %v556 = vpop.f32.mrb[0].mxu0
        %v557 = vpop.f32.mrb[0].mxu0
        %558 = vdwg.mxu0
        %v559 = vmax.f32 %v554, 0.0
        %560 = vadd.xlane.f32.xlu0 %v559
        %v561 = vpop.xlane.xlu0 %560
        %v562 = vmul.f32 %v561, 0.03125
        %v563 = vmul.f32 %v559, %v559
        %564 = vadd.xlane.f32.xlu0 %v563
        %v565 = vpop.xlane.xlu0 %564
        %v566 = vmul.f32 %v565, 0.03125
        %v567 = vmul.f32 %v562, %v562
        %v568 = vsub.f32 %v566, %v567
        %v569 = vsub.f32 %v559, %v562
        %v570 = vadd.f32 %v568, 1e-05
        %v571 = vrsqrt.pop %v570
        %v572 = vmul.f32 %v569, %v571
        %v573 = vlaneseq
        %v574 = vshrl.u32 %v573, 7
        %v575 = vsub.s32 1, %v574
        %v576 = vrot.slane %v465, %v575
        %v577 = vmul.f32 %v572, %v576
        %v578 = vlaneseq
        %v579 = vshrl.u32 %v578, 7
        %v580 = vsub.s32 2, %v579
        %v581 = vrot.slane %v465, %v580
        %v582 = vadd.f32 %v577, %v581
        %s583 = scalar_lea.vmem [#allocation8], 64
        %v584 = vld [vmem:[%s583] sm:$0xf]
        %v585 = vld [vmem:[%s583 + $0x4] sm:$0xf]
        %v586 = vld [vmem:[%s583 + $0x8] sm:$0xf]
        %v587 = vld [vmem:[%s583 + $0xc] sm:$0xf]
        %v588 = vld [vmem:[%s583 + $0x10] sm:$0xf]
        %v589 = vld [vmem:[%s583 + $0x14] sm:$0xf]
        %v590 = vld [vmem:[%s583 + $0x18] sm:$0xf]
        %v591 = vld [vmem:[%s583 + $0x1c] sm:$0xf]
        %v592 = vld [vmem:[%s583 + $0x20] sm:$0xf]
        %v593 = vld [vmem:[%s583 + $0x24] sm:$0xf]
        %v594 = vld [vmem:[%s583 + $0x28] sm:$0xf]
        %v595 = vld [vmem:[%s583 + $0x2c] sm:$0xf]
        %v596 = vld [vmem:[%s583 + $0x30] sm:$0xf]
        %v597 = vld [vmem:[%s583 + $0x34] sm:$0xf]
        %v598 = vld [vmem:[%s583 + $0x38] sm:$0xf]
        %v599 = vld [vmem:[%s583 + $0x3c] sm:$0xf]
        %s600 = scalar_lea.vmem [#allocation10], 4
        %v601 = vld [vmem:[%s600] sm:$0x7]
        %v602 = vpack.c.bf16 %v582, %v582
        %v603 = vlaneseq
        %v604 = vshrl.u32 %v603, 7
        %v605 = vsub.s32 0, %v604
        %v606 = vrot.slane %v601, %v605
        %v623 = vunpack.c.l.b16 %v584
        %v624 = vunpack.c.l.b16 %v585
        %v625 = vunpack.c.l.b16 %v586
        %v626 = vunpack.c.l.b16 %v587
        %v627 = vunpack.c.l.b16 %v588
        %v628 = vunpack.c.l.b16 %v589
        %v629 = vunpack.c.l.b16 %v590
        %v630 = vunpack.c.l.b16 %v591
        %v631 = vunpack.c.l.b16 %v592
        %v632 = vunpack.c.l.b16 %v593
        %v633 = vunpack.c.l.b16 %v594
        %v634 = vunpack.c.l.b16 %v595
        %v635 = vunpack.c.l.b16 %v596
        %v636 = vunpack.c.l.b16 %v597
        %v637 = vunpack.c.l.b16 %v598
        %v638 = vunpack.c.l.b16 %v599
        %v639 = vpack.c.b16 %v624, %v623
        %v640 = vpack.c.b16 %v626, %v625
        %v641 = vpack.c.b16 %v628, %v627
        %v642 = vpack.c.b16 %v630, %v629
        %v643 = vpack.c.b16 %v632, %v631
        %v644 = vpack.c.b16 %v634, %v633
        %v645 = vpack.c.b16 %v636, %v635
        %v646 = vpack.c.b16 %v638, %v637
        %655 = vmatprep.subr.bf16.mxu0 0
        %656 = vmatpush1.bf16.msra.mxu0 %v639
        %657 = vmatprep.subr.bf16.mxu0 0
        %658 = vmatpush1.bf16.msra.mxu0 %v640
        %659 = vmatprep.subr.bf16.mxu0 0
        %660 = vmatpush1.bf16.msra.mxu0 %v641
        %661 = vmatprep.subr.bf16.mxu0 0
        %662 = vmatpush1.bf16.msra.mxu0 %v642
        %663 = vmatprep.subr.bf16.mxu0 0
        %664 = vmatpush1.bf16.msra.mxu0 %v643
        %665 = vmatprep.subr.bf16.mxu0 0
        %666 = vmatpush1.bf16.msra.mxu0 %v644
        %667 = vmatprep.subr.bf16.mxu0 0
        %668 = vmatpush1.bf16.msra.mxu0 %v645
        %669 = vmatprep.subr.bf16.mxu0 0
        %670 = vmatpush1.bf16.msra.mxu0 %v646
        %671 = vmatprep.subr.bf16.mxu0 0
        %672 = vmatpush1.bf16.msra.mxu0 0
        %673 = vmatprep.subr.bf16.mxu0 0
        %674 = vmatpush1.bf16.msra.mxu0 0
        %675 = vmatprep.subr.bf16.mxu0 0
        %676 = vmatpush1.bf16.msra.mxu0 0
        %677 = vmatprep.subr.bf16.mxu0 0
        %678 = vmatpush1.bf16.msra.mxu0 0
        %679 = vmatprep.subr.bf16.mxu0 0
        %680 = vmatpush1.bf16.msra.mxu0 0
        %681 = vmatprep.subr.bf16.mxu0 0
        %682 = vmatpush1.bf16.msra.mxu0 0
        %683 = vmatprep.subr.bf16.mxu0 0
        %684 = vmatpush1.bf16.msra.mxu0 0
        %685 = vmatprep.subr.bf16.mxu0 0
        %686 = vmatpush1.bf16.msra.mxu0 0
        %687 = vmatprep.mubr.bf16.mxu0 0
        %688 = vmatmul.mubr.bf16.gmra.mrb[0].mxu0 %v602
        %v689 = vpop.f32.mrb[0].mxu0
        %v690 = vadd.f32 %v606, %v689
        %v691 = vpop.f32.mrb[0].mxu0
        %v692 = vpop.f32.mrb[0].mxu0
        %v693 = vpop.f32.mrb[0].mxu0
        %694 = vdwg.mxu0
        %v695 = vmax.f32 %v690, 0.0
        %696 = vadd.xlane.f32.xlu0 %v695
        %v697 = vpop.xlane.xlu0 %696
        %v698 = vmul.f32 %v697, 0.03125
        %v699 = vmul.f32 %v695, %v695
        %700 = vadd.xlane.f32.xlu0 %v699
        %v701 = vpop.xlane.xlu0 %700
        %v702 = vmul.f32 %v701, 0.03125
        %v703 = vmul.f32 %v698, %v698
        %v704 = vsub.f32 %v702, %v703
        %v705 = vsub.f32 %v695, %v698
        %v706 = vadd.f32 %v704, 1e-05
        %v707 = vrsqrt.pop %v706
        %v708 = vmul.f32 %v705, %v707
        %v709 = vlaneseq
        %v710 = vshrl.u32 %v709, 7
        %v711 = vsub.s32 1, %v710
        %v712 = vrot.slane %v601, %v711
        %v713 = vmul.f32 %v708, %v712
        %v714 = vlaneseq
        %v715 = vshrl.u32 %v714, 7
        %v716 = vsub.s32 2, %v715
        %v717 = vrot.slane %v601, %v716
        %v718 = vadd.f32 %v713, %v717
        %v719 = vpack.c.bf16 %v718, %v718
        %v720 = vld [vmem:[#allocation11] sm:$0xf]
        %v721 = vld [vmem:[#allocation11 + $0x4] sm:$0xf]
        %v722 = vld [vmem:[#allocation11 + $0x8] sm:$0xf]
        %v723 = vld [vmem:[#allocation11 + $0xc] sm:$0xf]
        %v724 = vld [vmem:[#allocation11 + $0x10] sm:$0xf]
        %v725 = vld [vmem:[#allocation11 + $0x14] sm:$0xf]
        %v726 = vld [vmem:[#allocation11 + $0x18] sm:$0xf]
        %v727 = vld [vmem:[#allocation11 + $0x1c] sm:$0xf]
        %v728 = vld [vmem:[#allocation11 + $0x20] sm:$0xf]
        %v729 = vld [vmem:[#allocation11 + $0x24] sm:$0xf]
        %v730 = vld [vmem:[#allocation11 + $0x28] sm:$0xf]
        %v731 = vld [vmem:[#allocation11 + $0x2c] sm:$0xf]
        %v732 = vld [vmem:[#allocation11 + $0x30] sm:$0xf]
        %v733 = vld [vmem:[#allocation11 + $0x34] sm:$0xf]
        %v734 = vld [vmem:[#allocation11 + $0x38] sm:$0xf]
        %v735 = vld [vmem:[#allocation11 + $0x3c] sm:$0xf]
        %v736 = vld [vmem:[#allocation7 + $0x1] sm:$0x1]
        %v737 = vlaneseq
        %v738 = vshrl.u32 %v737, 7
        %v739 = vsub.s32 0, %v738
        %v740 = vrot.slane %v736, %v739
        %v757 = vunpack.c.l.b16 %v720
        %v758 = vunpack.c.l.b16 %v721
        %v759 = vunpack.c.l.b16 %v722
        %v760 = vunpack.c.l.b16 %v723
        %v761 = vunpack.c.l.b16 %v724
        %v762 = vunpack.c.l.b16 %v725
        %v763 = vunpack.c.l.b16 %v726
        %v764 = vunpack.c.l.b16 %v727
        %v765 = vunpack.c.l.b16 %v728
        %v766 = vunpack.c.l.b16 %v729
        %v767 = vunpack.c.l.b16 %v730
        %v768 = vunpack.c.l.b16 %v731
        %v769 = vunpack.c.l.b16 %v732
        %v770 = vunpack.c.l.b16 %v733
        %v771 = vunpack.c.l.b16 %v734
        %v772 = vunpack.c.l.b16 %v735
        %v773 = vpack.c.b16 %v758, %v757
        %v774 = vpack.c.b16 %v760, %v759
        %v775 = vpack.c.b16 %v762, %v761
        %v776 = vpack.c.b16 %v764, %v763
        %v777 = vpack.c.b16 %v766, %v765
        %v778 = vpack.c.b16 %v768, %v767
        %v779 = vpack.c.b16 %v770, %v769
        %v780 = vpack.c.b16 %v772, %v771
        %789 = vmatprep.subr.bf16.mxu0 0
        %790 = vmatpush1.bf16.msra.mxu0 %v773
        %791 = vmatprep.subr.bf16.mxu0 0
        %792 = vmatpush1.bf16.msra.mxu0 %v774
        %793 = vmatprep.subr.bf16.mxu0 0
        %794 = vmatpush1.bf16.msra.mxu0 %v775
        %795 = vmatprep.subr.bf16.mxu0 0
        %796 = vmatpush1.bf16.msra.mxu0 %v776
        %797 = vmatprep.subr.bf16.mxu0 0
        %798 = vmatpush1.bf16.msra.mxu0 %v777
        %799 = vmatprep.subr.bf16.mxu0 0
        %800 = vmatpush1.bf16.msra.mxu0 %v778
        %801 = vmatprep.subr.bf16.mxu0 0
        %802 = vmatpush1.bf16.msra.mxu0 %v779
        %803 = vmatprep.subr.bf16.mxu0 0
        %804 = vmatpush1.bf16.msra.mxu0 %v780
        %805 = vmatprep.subr.bf16.mxu0 0
        %806 = vmatpush1.bf16.msra.mxu0 0
        %807 = vmatprep.subr.bf16.mxu0 0
        %808 = vmatpush1.bf16.msra.mxu0 0
        %809 = vmatprep.subr.bf16.mxu0 0
        %810 = vmatpush1.bf16.msra.mxu0 0
        %811 = vmatprep.subr.bf16.mxu0 0
        %812 = vmatpush1.bf16.msra.mxu0 0
        %813 = vmatprep.subr.bf16.mxu0 0
        %814 = vmatpush1.bf16.msra.mxu0 0
        %815 = vmatprep.subr.bf16.mxu0 0
        %816 = vmatpush1.bf16.msra.mxu0 0
        %817 = vmatprep.subr.bf16.mxu0 0
        %818 = vmatpush1.bf16.msra.mxu0 0
        %819 = vmatprep.subr.bf16.mxu0 0
        %820 = vmatpush1.bf16.msra.mxu0 0
        %821 = vmatprep.mubr.bf16.mxu0 0
        %822 = vmatmul.mubr.bf16.gmra.mrb[0].mxu0 %v719
        %v823 = vpop.f32.mrb[0].mxu0
        %v824 = vadd.f32 %v740, %v823
        %v825 = vpop.f32.mrb[0].mxu0
        %v826 = vpop.f32.mrb[0].mxu0
        %v827 = vpop.f32.mrb[0].mxu0
        %828 = vdwg.mxu0
        %829 = vst [vmem:[%s337] sm:$0xff] %v824
        %s830 = sand.u32 %s165, 1
        %s831 = scalar_lea.sflag [#allocation4], %s830
        %s832 = sand.u32 %s165, 1
        %s833 = smul.addr %s832, 8
        %s834 = scalar_lea.vmem [#allocation13], %s833
        // Predicated region
        $region69: #{tpu_custom_call.1} parent=43 // pred_check
          %p835 = pneg %p175
        $region70: #{tpu_custom_call.1} parent=43 // pred_check_branch
          %837 = sbr.rel (%p835) target = $region72
        $region71: #{tpu_custom_call.1} parent=43 // pred_region
          %s839 = ssub.s32 128, 128
          %840 = vsyncadd %s831, %s839
          %s841 = smul.addr %s26, 128
          %s842 = scalar_lea.hbm %s6, %s841
          %s844 = sshll.u32 %s834, 4
          %s845 = int_to_ptr.vmem [resolvable:$true] %s844
          %847 = dma.vmem_to_hbm [thread:$0]  %s845, 128, %s842, %s831
        $region72: #{tpu_custom_call.1} parent=43 // pred_fallthru
          _
      $region44: #{tpu_custom_call.1} parent=5 // pred_fallthru
        _
      %p848 = scmp.le.s32.totalorder 2, %s21
      // Predicated region
      $region73: #{tpu_custom_call.1} parent=5 // pred_check
        %p849 = pneg %p848
      $region74: #{tpu_custom_call.1} parent=5 // pred_check_branch
        %851 = sbr.rel (%p849) target = $region76
      $region75: #{tpu_custom_call.1} parent=5 // pred_region
        %s852 = ssub.s32 %s21, 2
        // Predicated region
        $region77: #{tpu_custom_call.1} parent=75 // pred_check
          %p853 = pneg %p181
        $region78: #{tpu_custom_call.1} parent=75 // pred_check_branch
          %855 = sbr.rel (%p853) target = $region80
        $region79: #{tpu_custom_call.1} parent=75 // pred_region
          %s856 = sand.u32 %s166, 1
          %s857 = scalar_lea.sflag [#allocation4], %s856
          %s858 = sand.u32 %s166, 1
          %s859 = smul.addr %s858, 8
          %s860 = scalar_lea.vmem [#allocation13], %s859
          %861 = dma.done %s857, 128
        $region80: #{tpu_custom_call.1} parent=75 // pred_fallthru
          _
      $region76: #{tpu_custom_call.1} parent=5 // pred_fallthru
        _
    $region6: #{tpu_custom_call.1} parent=1 // loop_footer
      %s25 = sadd.s32 1, %s21
    $region7: #{tpu_custom_call.1} parent=1 // loop_footer_branch
      %20 = sbr.rel target = $region3
    $region8: #{tpu_custom_call.1} parent=1 // loop_exit
      _
    %862 = vsyncpa [#allocation3], 1
    %s863 = scalar_lea.sflag [#allocation3], 1
    %864 = vsyncpa %s863, 1
    %865 = vsyncpa [#allocation6], 1
    %866 = vsyncpa [#allocation9], 1
    %867 = vsyncpa [#allocation12], 1
    %868 = vsyncpa [#allocation4], 1
    %s869 = scalar_lea.sflag [#allocation4], 1
    %870 = vsyncpa %s869, 1

// kernel: tpu_custom_call.1
$region0: #{tpu_custom_call.1}
  #allocation0 [shape = 'u32[]', space=smem, size = 0x4, offset = 0x4, fixed_abs, tag = 'smem constant byte address 0x4 - core index']
  #allocation1 [shape = 'u32[144,128]{1,0:T(1,128)}', space=vmem, size = 0x12000, scoped, tag = 'internal scratch']
  %s0 = inlined_call_operand.hbm [shape: bf16[16,128], index: 0, kind: input, shape index: {}]
  %s1 = inlined_call_operand.hbm [shape: bf16[128,128], index: 1, kind: input, shape index: {}]
  %s2 = inlined_call_operand.hbm [shape: f32[2,128], index: 2, kind: input, shape index: {}]
  %s3 = inlined_call_operand.hbm [shape: bf16[2,128,128], index: 3, kind: input, shape index: {}]
  %s4 = inlined_call_operand.hbm [shape: f32[2,3,128], index: 4, kind: input, shape index: {}]
  %s5 = inlined_call_operand.hbm [shape: bf16[128,128], index: 5, kind: input, shape index: {}]
  %s6 = inlined_call_operand.hbm [shape: f32[16,128], index: 6, kind: output, shape index: {}]
  %s7 = sld [smem:[#allocation0]]
  $region81: #{tpu_custom_call.1} parent=0
    _
  %s9 = ssub.s32 1, %s7
  %s10 = scalar_select 0, %s9, %s7
  $region1: #{tpu_custom_call.1} parent=0
    #allocation2 [shape = 'u8[4096]{0}', space=vmem, size = 0x1000, scoped, tag = 'input window, operand 0']
    #allocation3 [shape = 's32[2]{0}', space=sflag, size = 0x8, scoped, tag = 'scoped memory for tpu_custom_call.1']
    #allocation4 [shape = 's32[2]{0}', space=sflag, size = 0x8, scoped, tag = 'scoped memory for tpu_custom_call.1']
    #allocation5 [shape = 'u8[32768]{0}', space=vmem, size = 0x8000, scoped, tag = 'input window, operand 1, single buffered']
    #allocation6 [shape = 's32[1]{0}', space=sflag, size = 0x4, scoped, tag = 'scoped memory for tpu_custom_call.1']
    #allocation7 [shape = 'u8[1024]{0}', space=vmem, size = 0x400, scoped, tag = 'input window, operand 2, single buffered']
    #allocation8 [shape = 'u8[65536]{0}', space=vmem, size = 0x10000, scoped, tag = 'input window, operand 3, single buffered']
    #allocation9 [shape = 's32[1]{0}', space=sflag, size = 0x4, scoped, tag = 'scoped memory for tpu_custom_call.1']
    #allocation10 [shape = 'u8[4096]{0}', space=vmem, size = 0x1000, scoped, tag = 'input window, operand 4, single buffered']
    #allocation11 [shape = 'u8[32768]{0}', space=vmem, size = 0x8000, scoped, tag = 'input window, operand 5, single buffered']
    #allocation12 [shape = 's32[1]{0}', space=sflag, size = 0x4, scoped, tag = 'scoped memory for tpu_custom_call.1']
    #allocation13 [shape = 'u8[8192]{0}', space=vmem, size = 0x2000, scoped, tag = 'output window, operand 0']
    %11 = vsyncpa [#allocation3], 0
    %s12 = scalar_lea.sflag [#allocation3], 1
    %13 = vsyncpa %s12, 0
    %14 = vsyncpa [#allocation6], 0
    %15 = vsyncpa [#allocation9], 0
    %16 = vsyncpa [#allocation12], 0
    %17 = vsyncpa [#allocation4], 0
    %s18 = scalar_lea.sflag [#allocation4], 1
    %19 = vsyncpa %s18, 0
    loop: start=0, step=1, limit=4
    $region2: #{tpu_custom_call.1} parent=1 // loop_pre_header
      _
    $region3: #{tpu_custom_call.1} parent=1 // loop_header
      %s21 = sphi 0, %s25
      %p22 = scmp.ge.s32.totalorder %s21, 4
      %s31 = sphi 0, %s33
      %s34 = sphi 0, %s31
      %s35 = sphi 0, %s34
      %s51 = sphi 0, %s35
      %s55 = sphi 0, %s55
      %s57 = sphi 0, %s55
      %s58 = sphi 0, %s57
      %s72 = sphi 0, %s58
      %s76 = sphi 0, %s76
      %s78 = sphi 0, %s76
      %s79 = sphi 0, %s78
      %s93 = sphi 0, %s79
      %s97 = sphi 0, %s97
      %s99 = sphi 0, %s97
      %s100 = sphi 0, %s99
      %s114 = sphi 0, %s100
      %s118 = sphi 0, %s118
      %s120 = sphi 0, %s118
      %s121 = sphi 0, %s120
      %s135 = sphi 0, %s121
      %s139 = sphi 0, %s139
      %s141 = sphi 0, %s139
      %s142 = sphi 0, %s141
      %s156 = sphi 0, %s142
      %s162 = sphi 0, %s164
      %s165 = sphi 0, %s162
      %s166 = sphi 0, %s165
      %s182 = sphi 0, %s166
    $region4: #{tpu_custom_call.1} parent=1 // loop_header_branch
      %24 = sbr.rel (%p22) target = $region8
    $region5: #{tpu_custom_call.1} parent=1 // loop_body
      %s26 = ssub.s32 %s21, 1
      %s27 = ssub.s32 %s21, 2
      %s28 = sadd.s32 %s21, 1
      %s29 = ssub.s32 %s21, %s28
      %p30 = scmp.eq.s32.totalorder %s29, 0
      %s32 = sadd.s32 %s31, 1
      %s33 = scalar_select %p30, %s31, %s32
      %p36 = pneg %p30
      %p37 = scmp.eq.s32.totalorder %s21, 1
      %p38 = por %p36, %p37
      %p39 = scmp.ne.s32.totalorder %s31, %s34
      %p40 = scmp.eq.s32.totalorder %s21, 0
      %p41 = por %p39, %p40
      %p42 = scmp.ne.s32.totalorder %s31, %s34
      %p43 = scmp.eq.s32.totalorder %s26, 1
      %p44 = por %p42, %p43
      %p45 = scmp.ne.s32.totalorder %s34, %s35
      %p46 = scmp.eq.s32.totalorder %s26, 0
      %p47 = por %p45, %p46
      %p48 = scmp.ne.s32.totalorder %s34, %s35
      %p49 = scmp.eq.s32.totalorder %s27, 1
      %p50 = por %p48, %p49
      %p52 = scmp.ne.s32.totalorder %s35, %s51
      %p53 = scmp.eq.s32.totalorder %s27, 0
      %p54 = por %p52, %p53
      %s56 = sadd.s32 %s55, 1
      %p59 = scmp.eq.s32.totalorder %s21, 1
      %p60 = scmp.ne.s32.totalorder %s55, %s57
      %p61 = scmp.eq.s32.totalorder %s21, 0
      %p62 = por %p60, %p61
      %p63 = scmp.ne.s32.totalorder %s55, %s57
      %p64 = scmp.eq.s32.totalorder %s26, 1
      %p65 = por %p63, %p64
      %p66 = scmp.ne.s32.totalorder %s57, %s58
      %p67 = scmp.eq.s32.totalorder %s26, 0
      %p68 = por %p66, %p67
      %p69 = scmp.ne.s32.totalorder %s57, %s58
      %p70 = scmp.eq.s32.totalorder %s27, 1
      %p71 = por %p69, %p70
      %p73 = scmp.ne.s32.totalorder %s58, %s72
      %p74 = scmp.eq.s32.totalorder %s27, 0
      %p75 = por %p73, %p74
      %s77 = sadd.s32 %s76, 1
      %p80 = scmp.eq.s32.totalorder %s21, 1
      %p81 = scmp.ne.s32.totalorder %s76, %s78
      %p82 = scmp.eq.s32.totalorder %s21, 0
      %p83 = por %p81, %p82
      %p84 = scmp.ne.s32.totalorder %s76, %s78
      %p85 = scmp.eq.s32.totalorder %s26, 1
      %p86 = por %p84, %p85
      %p87 = scmp.ne.s32.totalorder %s78, %s79
      %p88 = scmp.eq.s32.totalorder %s26, 0
      %p89 = por %p87, %p88
      %p90 = scmp.ne.s32.totalorder %s78, %s79
      %p91 = scmp.eq.s32.totalorder %s27, 1
      %p92 = por %p90, %p91
      %p94 = scmp.ne.s32.totalorder %s79, %s93
      %p95 = scmp.eq.s32.totalorder %s27, 0
      %p96 = por %p94, %p95
      %s98 = sadd.s32 %s97, 1
      %p101 = scmp.eq.s32.totalorder %s21, 1
      %p102 = scmp.ne.s32.totalorder %s97, %s99
      %p103 = scmp.eq.s32.totalorder %s21, 0
      %p104 = por %p102, %p103
      %p105 = scmp.ne.s32.totalorder %s97, %s99
      %p106 = scmp.eq.s32.totalorder %s26, 1
      %p107 = por %p105, %p106
      %p108 = scmp.ne.s32.totalorder %s99, %s100
      %p109 = scmp.eq.s32.totalorder %s26, 0
      %p110 = por %p108, %p109
      %p111 = scmp.ne.s32.totalorder %s99, %s100
      %p112 = scmp.eq.s32.totalorder %s27, 1
      %p113 = por %p111, %p112
      %p115 = scmp.ne.s32.totalorder %s100, %s114
      %p116 = scmp.eq.s32.totalorder %s27, 0
      %p117 = por %p115, %p116
      %s119 = sadd.s32 %s118, 1
      %p122 = scmp.eq.s32.totalorder %s21, 1
      %p123 = scmp.ne.s32.totalorder %s118, %s120
      %p124 = scmp.eq.s32.totalorder %s21, 0
      %p125 = por %p123, %p124
      %p126 = scmp.ne.s32.totalorder %s118, %s120
      %p127 = scmp.eq.s32.totalorder %s26, 1
      %p128 = por %p126, %p127
      %p129 = scmp.ne.s32.totalorder %s120, %s121
      %p130 = scmp.eq.s32.totalorder %s26, 0
      %p131 = por %p129, %p130
      %p132 = scmp.ne.s32.totalorder %s120, %s121
      %p133 = scmp.eq.s32.totalorder %s27, 1
      %p134 = por %p132, %p133
      %p136 = scmp.ne.s32.totalorder %s121, %s135
      %p137 = scmp.eq.s32.totalorder %s27, 0
      %p138 = por %p136, %p137
      %s140 = sadd.s32 %s139, 1
      %p143 = scmp.eq.s32.totalorder %s21, 1
      %p144 = scmp.ne.s32.totalorder %s139, %s141
      %p145 = scmp.eq.s32.totalorder %s21, 0
      %p146 = por %p144, %p145
      %p147 = scmp.ne.s32.totalorder %s139, %s141
      %p148 = scmp.eq.s32.totalorder %s26, 1
      %p149 = por %p147, %p148
      %p150 = scmp.ne.s32.totalorder %s141, %s142
      %p151 = scmp.eq.s32.totalorder %s26, 0
      %p152 = por %p150, %p151
      %p153 = scmp.ne.s32.totalorder %s141, %s142
      %p154 = scmp.eq.s32.totalorder %s27, 1
      %p155 = por %p153, %p154
      %p157 = scmp.ne.s32.totalorder %s142, %s156
      %p158 = scmp.eq.s32.totalorder %s27, 0
      %p159 = por %p157, %p158
      %s160 = ssub.s32 %s21, %s28
      %p161 = scmp.eq.s32.totalorder %s160, 0
      %s163 = sadd.s32 %s162, 1
      %s164 = scalar_select %p161, %s162, %s163
      %p167 = pneg %p161
      %p168 = scmp.eq.s32.totalorder %s21, 1
      %p169 = por %p167, %p168
      %p170 = scmp.ne.s32.totalorder %s162, %s165
      %p171 = scmp.eq.s32.totalorder %s21, 0
      %p172 = por %p170, %p171
      %p173 = scmp.ne.s32.totalorder %s162, %s165
      %p174 = scmp.eq.s32.totalorder %s26, 1
      %p175 = por %p173, %p174
      %p176 = scmp.ne.s32.totalorder %s165, %s166
      %p177 = scmp.eq.s32.totalorder %s26, 0
      %p178 = por %p176, %p177
      %p179 = scmp.ne.s32.totalorder %s165, %s166
      %p180 = scmp.eq.s32.totalorder %s27, 1
      %p181 = por %p179, %p180
      %p183 = scmp.ne.s32.totalorder %s166, %s182
      %p184 = scmp.eq.s32.totalorder %s27, 0
      %p185 = por %p183, %p184
      %p186 = scmp.le.s32.totalorder 1, %s21
      %p187 = scmp.lt.s32.totalorder %s21, 3
      %p188 = pnand %p186, %p187
      %p189 = pneg %p188
      // Predicated region
      $region9: #{tpu_custom_call.1} parent=5 // pred_check
        _
      $region10: #{tpu_custom_call.1} parent=5 // pred_check_branch
        %191 = sbr.rel (%p188) target = $region12
      $region11: #{tpu_custom_call.1} parent=5 // pred_region
        %s192 = ssub.s32 %s21, 1
        // Predicated region
        $region13: #{tpu_custom_call.1} parent=11 // pred_check
          %p193 = pneg %p68
        $region14: #{tpu_custom_call.1} parent=11 // pred_check_branch
          %195 = sbr.rel (%p193) target = $region16
        $region15: #{tpu_custom_call.1} parent=11 // pred_region
          %s197 = ssub.s32 1024, 1024
          %198 = vsyncadd [#allocation6], %s197
          %s199 = sshll.u32 [#allocation5], 4
          %s200 = int_to_ptr.vmem [resolvable:$true] %s199
          %205 = dma.hbm_to_vmem [thread:$0]  %s1, 1024, %s200, [#allocation6], 64, 64, 4
        $region16: #{tpu_custom_call.1} parent=11 // pred_fallthru
          _
        // Predicated region
        $region17: #{tpu_custom_call.1} parent=11 // pred_check
          %p206 = pneg %p89
        $region18: #{tpu_custom_call.1} parent=11 // pred_check_branch
          %208 = sbr.rel (%p206) target = $region20
        $region19: #{tpu_custom_call.1} parent=11 // pred_region
          %s210 = ssub.s32 32, 32
          %211 = vsyncadd [#allocation6], %s210
          %s213 = sshll.u32 [#allocation7], 4
          %s214 = int_to_ptr.vmem [resolvable:$true] %s213
          %216 = dma.hbm_to_vmem [thread:$0]  %s2, 32, %s214, [#allocation6]
        $region20: #{tpu_custom_call.1} parent=11 // pred_fallthru
          _
        // Predicated region
        $region21: #{tpu_custom_call.1} parent=11 // pred_check
          %p217 = pneg %p110
        $region22: #{tpu_custom_call.1} parent=11 // pred_check_branch
          %219 = sbr.rel (%p217) target = $region24
        $region23: #{tpu_custom_call.1} parent=11 // pred_region
          %s221 = ssub.s32 2048, 2048
          %222 = vsyncadd [#allocation9], %s221
          %s223 = sshll.u32 [#allocation8], 4
          %s224 = int_to_ptr.vmem [resolvable:$true] %s223
          %229 = dma.hbm_to_vmem [thread:$0]  %s3, 2048, %s224, [#allocation9], 64, 64, 4
        $region24: #{tpu_custom_call.1} parent=11 // pred_fallthru
          _
        // Predicated region
        $region25: #{tpu_custom_call.1} parent=11 // pred_check
          %p230 = pneg %p131
        $region26: #{tpu_custom_call.1} parent=11 // pred_check_branch
          %232 = sbr.rel (%p230) target = $region28
        $region27: #{tpu_custom_call.1} parent=11 // pred_region
          %s234 = ssub.s32 128, 128
          %235 = vsyncadd [#allocation9], %s234
          %s236 = sshll.u32 [#allocation10], 4
          %s237 = int_to_ptr.vmem [resolvable:$true] %s236
          %242 = dma.hbm_to_vmem [thread:$0]  %s4, 128, %s237, [#allocation9], 64, 64, 4
        $region28: #{tpu_custom_call.1} parent=11 // pred_fallthru
          _
        // Predicated region
        $region29: #{tpu_custom_call.1} parent=11 // pred_check
          %p243 = pneg %p152
        $region30: #{tpu_custom_call.1} parent=11 // pred_check_branch
          %245 = sbr.rel (%p243) target = $region32
        $region31: #{tpu_custom_call.1} parent=11 // pred_region
          %s247 = ssub.s32 1024, 1024
          %248 = vsyncadd [#allocation12], %s247
          %s249 = sshll.u32 [#allocation11], 4
          %s250 = int_to_ptr.vmem [resolvable:$true] %s249
          %255 = dma.hbm_to_vmem [thread:$0]  %s5, 1024, %s250, [#allocation12], 64, 64, 4
        $region32: #{tpu_custom_call.1} parent=11 // pred_fallthru
          _
      $region12: #{tpu_custom_call.1} parent=5 // pred_fallthru
        _
      %p256 = scmp.lt.s32.totalorder %s21, 2
      // Predicated region
      $region33: #{tpu_custom_call.1} parent=5 // pred_check
        %p257 = pneg %p256
      $region34: #{tpu_custom_call.1} parent=5 // pred_check_branch
        %259 = sbr.rel (%p257) target = $region36
      $region35: #{tpu_custom_call.1} parent=5 // pred_region
        // Predicated region
        $region37: #{tpu_custom_call.1} parent=35 // pred_check
          %p260 = pneg %p41
        $region38: #{tpu_custom_call.1} parent=35 // pred_check_branch
          %262 = sbr.rel (%p260) target = $region40
        $region39: #{tpu_custom_call.1} parent=35 // pred_region
          %s263 = sand.u32 %s31, 1
          %s264 = scalar_lea.sflag [#allocation3], %s263
          %s265 = sand.u32 %s31, 1
          %s266 = smul.addr %s265, 4
          %s267 = scalar_lea.vmem [#allocation2], %s266
          %s269 = ssub.s32 64, 64
          %270 = vsyncadd %s264, %s269
          %s271 = smul.addr %s21, 64
          %s272 = scalar_lea.hbm %s0, %s271
          %s274 = sshll.u32 %s267, 4
          %s275 = int_to_ptr.vmem [resolvable:$true] %s274
          %277 = dma.hbm_to_vmem [thread:$0]  %s272, 64, %s275, %s264
        $region40: #{tpu_custom_call.1} parent=35 // pred_fallthru
          _
      $region36: #{tpu_custom_call.1} parent=5 // pred_fallthru
        _
      %p278 = scmp.le.s32.totalorder 1, %s21
      %p279 = scmp.lt.s32.totalorder %s21, 3
      %p280 = pnand %p278, %p279
      %p281 = pneg %p280
      // Predicated region
      $region41: #{tpu_custom_call.1} parent=5 // pred_check
        _
      $region42: #{tpu_custom_call.1} parent=5 // pred_check_branch
        %283 = sbr.rel (%p280) target = $region44
      $region43: #{tpu_custom_call.1} parent=5 // pred_region
        %s284 = ssub.s32 %s21, 1
        %s285 = sand.u32 %s34, 1
        %s286 = scalar_lea.sflag [#allocation3], %s285
        %s287 = sand.u32 %s34, 1
        %s288 = smul.addr %s287, 4
        %s289 = scalar_lea.vmem [#allocation2], %s288
        // Predicated region
        $region45: #{tpu_custom_call.1} parent=43 // pred_check
          %p290 = pneg %p47
        $region46: #{tpu_custom_call.1} parent=43 // pred_check_branch
          %292 = sbr.rel (%p290) target = $region48
        $region47: #{tpu_custom_call.1} parent=43 // pred_region
          %293 = dma.done %s286, 64
        $region48: #{tpu_custom_call.1} parent=43 // pred_fallthru
          _
        // Predicated region
        $region49: #{tpu_custom_call.1} parent=43 // pred_check
          %p294 = pneg %p68
        $region50: #{tpu_custom_call.1} parent=43 // pred_check_branch
          %296 = sbr.rel (%p294) target = $region52
        $region51: #{tpu_custom_call.1} parent=43 // pred_region
          %297 = dma.done [#allocation6], 1024
        $region52: #{tpu_custom_call.1} parent=43 // pred_fallthru
          _
        // Predicated region
        $region53: #{tpu_custom_call.1} parent=43 // pred_check
          %p298 = pneg %p89
        $region54: #{tpu_custom_call.1} parent=43 // pred_check_branch
          %300 = sbr.rel (%p298) target = $region56
        $region55: #{tpu_custom_call.1} parent=43 // pred_region
          %301 = dma.done [#allocation6], 32
        $region56: #{tpu_custom_call.1} parent=43 // pred_fallthru
          _
        // Predicated region
        $region57: #{tpu_custom_call.1} parent=43 // pred_check
          %p302 = pneg %p110
        $region58: #{tpu_custom_call.1} parent=43 // pred_check_branch
          %304 = sbr.rel (%p302) target = $region60
        $region59: #{tpu_custom_call.1} parent=43 // pred_region
          %305 = dma.done [#allocation9], 2048
        $region60: #{tpu_custom_call.1} parent=43 // pred_fallthru
          _
        // Predicated region
        $region61: #{tpu_custom_call.1} parent=43 // pred_check
          %p306 = pneg %p131
        $region62: #{tpu_custom_call.1} parent=43 // pred_check_branch
          %308 = sbr.rel (%p306) target = $region64
        $region63: #{tpu_custom_call.1} parent=43 // pred_region
          %309 = dma.done [#allocation9], 128
        $region64: #{tpu_custom_call.1} parent=43 // pred_fallthru
          _
        // Predicated region
        $region65: #{tpu_custom_call.1} parent=43 // pred_check
          %p310 = pneg %p152
        $region66: #{tpu_custom_call.1} parent=43 // pred_check_branch
          %312 = sbr.rel (%p310) target = $region68
        $region67: #{tpu_custom_call.1} parent=43 // pred_region
          %313 = dma.done [#allocation12], 1024
        $region68: #{tpu_custom_call.1} parent=43 // pred_fallthru
          _
        %s314 = sand.u32 %s34, 1
        %s315 = scalar_lea.sflag [#allocation3], %s314
        %s316 = sand.u32 %s34, 1
        %s317 = smul.addr %s316, 4
        %s318 = scalar_lea.vmem [#allocation2], %s317
        %p319 = pneg %p47
        %p320 = pneg %p44
        %p321 = pneg %p68
        %p322 = pneg %p65
        %p323 = pneg %p89
        %p324 = pneg %p86
        %p325 = pneg %p110
        %p326 = pneg %p107
        %p327 = pneg %p131
        %p328 = pneg %p128
        %p329 = pneg %p152
        %p330 = pneg %p149
        %p331 = pneg %p178
        %p332 = pneg %p175
        %s333 = sand.u32 %s165, 1
        %s334 = scalar_lea.sflag [#allocation4], %s333
        %s335 = sand.u32 %s165, 1
        %s336 = smul.addr %s335, 8
        %s337 = scalar_lea.vmem [#allocation13], %s336
        %v339 = vld [vmem:[%s289] sm:$0xf]
        %v340 = vld [vmem:[#allocation5] sm:$0xf]
        %v341 = vld [vmem:[#allocation5 + $0x4] sm:$0xf]
        %v342 = vld [vmem:[#allocation5 + $0x8] sm:$0xf]
        %v343 = vld [vmem:[#allocation5 + $0xc] sm:$0xf]
        %v344 = vld [vmem:[#allocation5 + $0x10] sm:$0xf]
        %v345 = vld [vmem:[#allocation5 + $0x14] sm:$0xf]
        %v346 = vld [vmem:[#allocation5 + $0x18] sm:$0xf]
        %v347 = vld [vmem:[#allocation5 + $0x1c] sm:$0xf]
        %v348 = vld [vmem:[#allocation5 + $0x20] sm:$0xf]
        %v349 = vld [vmem:[#allocation5 + $0x24] sm:$0xf]
        %v350 = vld [vmem:[#allocation5 + $0x28] sm:$0xf]
        %v351 = vld [vmem:[#allocation5 + $0x2c] sm:$0xf]
        %v352 = vld [vmem:[#allocation5 + $0x30] sm:$0xf]
        %v353 = vld [vmem:[#allocation5 + $0x34] sm:$0xf]
        %v354 = vld [vmem:[#allocation5 + $0x38] sm:$0xf]
        %v355 = vld [vmem:[#allocation5 + $0x3c] sm:$0xf]
        %v356 = vld [vmem:[#allocation7] sm:$0x1]
        %v357 = vlaneseq
        %v358 = vshrl.u32 %v357, 7
        %v359 = vsub.s32 0, %v358
        %v360 = vrot.slane %v356, %v359
        %v377 = vunpack.c.l.b16 %v340
        %v378 = vunpack.c.l.b16 %v341
        %v379 = vunpack.c.l.b16 %v342
        %v380 = vunpack.c.l.b16 %v343
        %v381 = vunpack.c.l.b16 %v344
        %v382 = vunpack.c.l.b16 %v345
        %v383 = vunpack.c.l.b16 %v346
        %v384 = vunpack.c.l.b16 %v347
        %v385 = vunpack.c.l.b16 %v348
        %v386 = vunpack.c.l.b16 %v349
        %v387 = vunpack.c.l.b16 %v350
        %v388 = vunpack.c.l.b16 %v351
        %v389 = vunpack.c.l.b16 %v352
        %v390 = vunpack.c.l.b16 %v353
        %v391 = vunpack.c.l.b16 %v354
        %v392 = vunpack.c.l.b16 %v355
        %v393 = vpack.c.b16 %v378, %v377
        %v394 = vpack.c.b16 %v380, %v379
        %v395 = vpack.c.b16 %v382, %v381
        %v396 = vpack.c.b16 %v384, %v383
        %v397 = vpack.c.b16 %v386, %v385
        %v398 = vpack.c.b16 %v388, %v387
        %v399 = vpack.c.b16 %v390, %v389
        %v400 = vpack.c.b16 %v392, %v391
        %409 = vmatprep.subr.bf16.mxu0 0
        %410 = vmatpush1.bf16.msra.mxu0 %v393
        %411 = vmatprep.subr.bf16.mxu0 0
        %412 = vmatpush1.bf16.msra.mxu0 %v394
        %413 = vmatprep.subr.bf16.mxu0 0
        %414 = vmatpush1.bf16.msra.mxu0 %v395
        %415 = vmatprep.subr.bf16.mxu0 0
        %416 = vmatpush1.bf16.msra.mxu0 %v396
        %417 = vmatprep.subr.bf16.mxu0 0
        %418 = vmatpush1.bf16.msra.mxu0 %v397
        %419 = vmatprep.subr.bf16.mxu0 0
        %420 = vmatpush1.bf16.msra.mxu0 %v398
        %421 = vmatprep.subr.bf16.mxu0 0
        %422 = vmatpush1.bf16.msra.mxu0 %v399
        %423 = vmatprep.subr.bf16.mxu0 0
        %424 = vmatpush1.bf16.msra.mxu0 %v400
        %425 = vmatprep.subr.bf16.mxu0 0
        %426 = vmatpush1.bf16.msra.mxu0 0
        %427 = vmatprep.subr.bf16.mxu0 0
        %428 = vmatpush1.bf16.msra.mxu0 0
        %429 = vmatprep.subr.bf16.mxu0 0
        %430 = vmatpush1.bf16.msra.mxu0 0
        %431 = vmatprep.subr.bf16.mxu0 0
        %432 = vmatpush1.bf16.msra.mxu0 0
        %433 = vmatprep.subr.bf16.mxu0 0
        %434 = vmatpush1.bf16.msra.mxu0 0
        %435 = vmatprep.subr.bf16.mxu0 0
        %436 = vmatpush1.bf16.msra.mxu0 0
        %437 = vmatprep.subr.bf16.mxu0 0
        %438 = vmatpush1.bf16.msra.mxu0 0
        %439 = vmatprep.subr.bf16.mxu0 0
        %440 = vmatpush1.bf16.msra.mxu0 0
        %441 = vmatprep.mubr.bf16.mxu0 0
        %442 = vmatmul.mubr.bf16.gmra.mrb[0].mxu0 %v339
        %v443 = vpop.f32.mrb[0].mxu0
        %v444 = vadd.f32 %v360, %v443
        %v445 = vpop.f32.mrb[0].mxu0
        %v446 = vpop.f32.mrb[0].mxu0
        %v447 = vpop.f32.mrb[0].mxu0
        %448 = vdwg.mxu0
        %v449 = vld [vmem:[#allocation8] sm:$0xf]
        %v450 = vld [vmem:[#allocation8 + $0x4] sm:$0xf]
        %v451 = vld [vmem:[#allocation8 + $0x8] sm:$0xf]
        %v452 = vld [vmem:[#allocation8 + $0xc] sm:$0xf]
        %v453 = vld [vmem:[#allocation8 + $0x10] sm:$0xf]
        %v454 = vld [vmem:[#allocation8 + $0x14] sm:$0xf]
        %v455 = vld [vmem:[#allocation8 + $0x18] sm:$0xf]
        %v456 = vld [vmem:[#allocation8 + $0x1c] sm:$0xf]
        %v457 = vld [vmem:[#allocation8 + $0x20] sm:$0xf]
        %v458 = vld [vmem:[#allocation8 + $0x24] sm:$0xf]
        %v459 = vld [vmem:[#allocation8 + $0x28] sm:$0xf]
        %v460 = vld [vmem:[#allocation8 + $0x2c] sm:$0xf]
        %v461 = vld [vmem:[#allocation8 + $0x30] sm:$0xf]
        %v462 = vld [vmem:[#allocation8 + $0x34] sm:$0xf]
        %v463 = vld [vmem:[#allocation8 + $0x38] sm:$0xf]
        %v464 = vld [vmem:[#allocation8 + $0x3c] sm:$0xf]
        %v465 = vld [vmem:[#allocation10] sm:$0x7]
        %v466 = vpack.c.bf16 %v444, %v444
        %v467 = vlaneseq
        %v468 = vshrl.u32 %v467, 7
        %v469 = vsub.s32 0, %v468
        %v470 = vrot.slane %v465, %v469
        %v487 = vunpack.c.l.b16 %v449
        %v488 = vunpack.c.l.b16 %v450
        %v489 = vunpack.c.l.b16 %v451
        %v490 = vunpack.c.l.b16 %v452
        %v491 = vunpack.c.l.b16 %v453
        %v492 = vunpack.c.l.b16 %v454
        %v493 = vunpack.c.l.b16 %v455
        %v494 = vunpack.c.l.b16 %v456
        %v495 = vunpack.c.l.b16 %v457
        %v496 = vunpack.c.l.b16 %v458
        %v497 = vunpack.c.l.b16 %v459
        %v498 = vunpack.c.l.b16 %v460
        %v499 = vunpack.c.l.b16 %v461
        %v500 = vunpack.c.l.b16 %v462
        %v501 = vunpack.c.l.b16 %v463
        %v502 = vunpack.c.l.b16 %v464
        %v503 = vpack.c.b16 %v488, %v487
        %v504 = vpack.c.b16 %v490, %v489
        %v505 = vpack.c.b16 %v492, %v491
        %v506 = vpack.c.b16 %v494, %v493
        %v507 = vpack.c.b16 %v496, %v495
        %v508 = vpack.c.b16 %v498, %v497
        %v509 = vpack.c.b16 %v500, %v499
        %v510 = vpack.c.b16 %v502, %v501
        %519 = vmatprep.subr.bf16.mxu0 0
        %520 = vmatpush1.bf16.msra.mxu0 %v503
        %521 = vmatprep.subr.bf16.mxu0 0
        %522 = vmatpush1.bf16.msra.mxu0 %v504
        %523 = vmatprep.subr.bf16.mxu0 0
        %524 = vmatpush1.bf16.msra.mxu0 %v505
        %525 = vmatprep.subr.bf16.mxu0 0
        %526 = vmatpush1.bf16.msra.mxu0 %v506
        %527 = vmatprep.subr.bf16.mxu0 0
        %528 = vmatpush1.bf16.msra.mxu0 %v507
        %529 = vmatprep.subr.bf16.mxu0 0
        %530 = vmatpush1.bf16.msra.mxu0 %v508
        %531 = vmatprep.subr.bf16.mxu0 0
        %532 = vmatpush1.bf16.msra.mxu0 %v509
        %533 = vmatprep.subr.bf16.mxu0 0
        %534 = vmatpush1.bf16.msra.mxu0 %v510
        %535 = vmatprep.subr.bf16.mxu0 0
        %536 = vmatpush1.bf16.msra.mxu0 0
        %537 = vmatprep.subr.bf16.mxu0 0
        %538 = vmatpush1.bf16.msra.mxu0 0
        %539 = vmatprep.subr.bf16.mxu0 0
        %540 = vmatpush1.bf16.msra.mxu0 0
        %541 = vmatprep.subr.bf16.mxu0 0
        %542 = vmatpush1.bf16.msra.mxu0 0
        %543 = vmatprep.subr.bf16.mxu0 0
        %544 = vmatpush1.bf16.msra.mxu0 0
        %545 = vmatprep.subr.bf16.mxu0 0
        %546 = vmatpush1.bf16.msra.mxu0 0
        %547 = vmatprep.subr.bf16.mxu0 0
        %548 = vmatpush1.bf16.msra.mxu0 0
        %549 = vmatprep.subr.bf16.mxu0 0
        %550 = vmatpush1.bf16.msra.mxu0 0
        %551 = vmatprep.mubr.bf16.mxu0 0
        %552 = vmatmul.mubr.bf16.gmra.mrb[0].mxu0 %v466
        %v553 = vpop.f32.mrb[0].mxu0
        %v554 = vadd.f32 %v470, %v553
        %v555 = vpop.f32.mrb[0].mxu0
        %v556 = vpop.f32.mrb[0].mxu0
        %v557 = vpop.f32.mrb[0].mxu0
        %558 = vdwg.mxu0
        %v559 = vmax.f32 %v554, 0.0
        %560 = vadd.xlane.f32.xlu0 %v559
        %v561 = vpop.xlane.xlu0 %560
        %v562 = vmul.f32 %v561, 0.03125
        %v563 = vmul.f32 %v559, %v559
        %564 = vadd.xlane.f32.xlu0 %v563
        %v565 = vpop.xlane.xlu0 %564
        %v566 = vmul.f32 %v565, 0.03125
        %v567 = vmul.f32 %v562, %v562
        %v568 = vsub.f32 %v566, %v567
        %v569 = vsub.f32 %v559, %v562
        %v570 = vadd.f32 %v568, 1e-05
        %v571 = vrsqrt.pop %v570
        %v572 = vmul.f32 %v569, %v571
        %v573 = vlaneseq
        %v574 = vshrl.u32 %v573, 7
        %v575 = vsub.s32 1, %v574
        %v576 = vrot.slane %v465, %v575
        %v577 = vmul.f32 %v572, %v576
        %v578 = vlaneseq
        %v579 = vshrl.u32 %v578, 7
        %v580 = vsub.s32 2, %v579
        %v581 = vrot.slane %v465, %v580
        %v582 = vadd.f32 %v577, %v581
        %s583 = scalar_lea.vmem [#allocation8], 64
        %v584 = vld [vmem:[%s583] sm:$0xf]
        %v585 = vld [vmem:[%s583 + $0x4] sm:$0xf]
        %v586 = vld [vmem:[%s583 + $0x8] sm:$0xf]
        %v587 = vld [vmem:[%s583 + $0xc] sm:$0xf]
        %v588 = vld [vmem:[%s583 + $0x10] sm:$0xf]
        %v589 = vld [vmem:[%s583 + $0x14] sm:$0xf]
        %v590 = vld [vmem:[%s583 + $0x18] sm:$0xf]
        %v591 = vld [vmem:[%s583 + $0x1c] sm:$0xf]
        %v592 = vld [vmem:[%s583 + $0x20] sm:$0xf]
        %v593 = vld [vmem:[%s583 + $0x24] sm:$0xf]
        %v594 = vld [vmem:[%s583 + $0x28] sm:$0xf]
        %v595 = vld [vmem:[%s583 + $0x2c] sm:$0xf]
        %v596 = vld [vmem:[%s583 + $0x30] sm:$0xf]
        %v597 = vld [vmem:[%s583 + $0x34] sm:$0xf]
        %v598 = vld [vmem:[%s583 + $0x38] sm:$0xf]
        %v599 = vld [vmem:[%s583 + $0x3c] sm:$0xf]
        %s600 = scalar_lea.vmem [#allocation10], 4
        %v601 = vld [vmem:[%s600] sm:$0x7]
        %v602 = vpack.c.bf16 %v582, %v582
        %v603 = vlaneseq
        %v604 = vshrl.u32 %v603, 7
        %v605 = vsub.s32 0, %v604
        %v606 = vrot.slane %v601, %v605
        %v623 = vunpack.c.l.b16 %v584
        %v624 = vunpack.c.l.b16 %v585
        %v625 = vunpack.c.l.b16 %v586
        %v626 = vunpack.c.l.b16 %v587
        %v627 = vunpack.c.l.b16 %v588
        %v628 = vunpack.c.l.b16 %v589
        %v629 = vunpack.c.l.b16 %v590
        %v630 = vunpack.c.l.b16 %v591
        %v631 = vunpack.c.l.b16 %v592
        %v632 = vunpack.c.l.b16 %v593
        %v633 = vunpack.c.l.b16 %v594
        %v634 = vunpack.c.l.b16 %v595
        %v635 = vunpack.c.l.b16 %v596
        %v636 = vunpack.c.l.b16 %v597
        %v637 = vunpack.c.l.b16 %v598
        %v638 = vunpack.c.l.b16 %v599
        %v639 = vpack.c.b16 %v624, %v623
        %v640 = vpack.c.b16 %v626, %v625
        %v641 = vpack.c.b16 %v628, %v627
        %v642 = vpack.c.b16 %v630, %v629
        %v643 = vpack.c.b16 %v632, %v631
        %v644 = vpack.c.b16 %v634, %v633
        %v645 = vpack.c.b16 %v636, %v635
        %v646 = vpack.c.b16 %v638, %v637
        %655 = vmatprep.subr.bf16.mxu0 0
        %656 = vmatpush1.bf16.msra.mxu0 %v639
        %657 = vmatprep.subr.bf16.mxu0 0
        %658 = vmatpush1.bf16.msra.mxu0 %v640
        %659 = vmatprep.subr.bf16.mxu0 0
        %660 = vmatpush1.bf16.msra.mxu0 %v641
        %661 = vmatprep.subr.bf16.mxu0 0
        %662 = vmatpush1.bf16.msra.mxu0 %v642
        %663 = vmatprep.subr.bf16.mxu0 0
        %664 = vmatpush1.bf16.msra.mxu0 %v643
        %665 = vmatprep.subr.bf16.mxu0 0
        %666 = vmatpush1.bf16.msra.mxu0 %v644
        %667 = vmatprep.subr.bf16.mxu0 0
        %668 = vmatpush1.bf16.msra.mxu0 %v645
        %669 = vmatprep.subr.bf16.mxu0 0
        %670 = vmatpush1.bf16.msra.mxu0 %v646
        %671 = vmatprep.subr.bf16.mxu0 0
        %672 = vmatpush1.bf16.msra.mxu0 0
        %673 = vmatprep.subr.bf16.mxu0 0
        %674 = vmatpush1.bf16.msra.mxu0 0
        %675 = vmatprep.subr.bf16.mxu0 0
        %676 = vmatpush1.bf16.msra.mxu0 0
        %677 = vmatprep.subr.bf16.mxu0 0
        %678 = vmatpush1.bf16.msra.mxu0 0
        %679 = vmatprep.subr.bf16.mxu0 0
        %680 = vmatpush1.bf16.msra.mxu0 0
        %681 = vmatprep.subr.bf16.mxu0 0
        %682 = vmatpush1.bf16.msra.mxu0 0
        %683 = vmatprep.subr.bf16.mxu0 0
        %684 = vmatpush1.bf16.msra.mxu0 0
        %685 = vmatprep.subr.bf16.mxu0 0
        %686 = vmatpush1.bf16.msra.mxu0 0
        %687 = vmatprep.mubr.bf16.mxu0 0
        %688 = vmatmul.mubr.bf16.gmra.mrb[0].mxu0 %v602
        %v689 = vpop.f32.mrb[0].mxu0
        %v690 = vadd.f32 %v606, %v689
        %v691 = vpop.f32.mrb[0].mxu0
        %v692 = vpop.f32.mrb[0].mxu0
        %v693 = vpop.f32.mrb[0].mxu0
        %694 = vdwg.mxu0
        %v695 = vmax.f32 %v690, 0.0
        %696 = vadd.xlane.f32.xlu0 %v695
        %v697 = vpop.xlane.xlu0 %696
        %v698 = vmul.f32 %v697, 0.03125
        %v699 = vmul.f32 %v695, %v695
        %700 = vadd.xlane.f32.xlu0 %v699
        %v701 = vpop.xlane.xlu0 %700
        %v702 = vmul.f32 %v701, 0.03125
        %v703 = vmul.f32 %v698, %v698
        %v704 = vsub.f32 %v702, %v703
        %v705 = vsub.f32 %v695, %v698
        %v706 = vadd.f32 %v704, 1e-05
        %v707 = vrsqrt.pop %v706
        %v708 = vmul.f32 %v705, %v707
        %v709 = vlaneseq
        %v710 = vshrl.u32 %v709, 7
        %v711 = vsub.s32 1, %v710
        %v712 = vrot.slane %v601, %v711
        %v713 = vmul.f32 %v708, %v712
        %v714 = vlaneseq
        %v715 = vshrl.u32 %v714, 7
        %v716 = vsub.s32 2, %v715
        %v717 = vrot.slane %v601, %v716
        %v718 = vadd.f32 %v713, %v717
        %v719 = vpack.c.bf16 %v718, %v718
        %v720 = vld [vmem:[#allocation11] sm:$0xf]
        %v721 = vld [vmem:[#allocation11 + $0x4] sm:$0xf]
        %v722 = vld [vmem:[#allocation11 + $0x8] sm:$0xf]
        %v723 = vld [vmem:[#allocation11 + $0xc] sm:$0xf]
        %v724 = vld [vmem:[#allocation11 + $0x10] sm:$0xf]
        %v725 = vld [vmem:[#allocation11 + $0x14] sm:$0xf]
        %v726 = vld [vmem:[#allocation11 + $0x18] sm:$0xf]
        %v727 = vld [vmem:[#allocation11 + $0x1c] sm:$0xf]
        %v728 = vld [vmem:[#allocation11 + $0x20] sm:$0xf]
        %v729 = vld [vmem:[#allocation11 + $0x24] sm:$0xf]
        %v730 = vld [vmem:[#allocation11 + $0x28] sm:$0xf]
        %v731 = vld [vmem:[#allocation11 + $0x2c] sm:$0xf]
        %v732 = vld [vmem:[#allocation11 + $0x30] sm:$0xf]
        %v733 = vld [vmem:[#allocation11 + $0x34] sm:$0xf]
        %v734 = vld [vmem:[#allocation11 + $0x38] sm:$0xf]
        %v735 = vld [vmem:[#allocation11 + $0x3c] sm:$0xf]
        %v736 = vld [vmem:[#allocation7 + $0x1] sm:$0x1]
        %v737 = vlaneseq
        %v738 = vshrl.u32 %v737, 7
        %v739 = vsub.s32 0, %v738
        %v740 = vrot.slane %v736, %v739
        %v757 = vunpack.c.l.b16 %v720
        %v758 = vunpack.c.l.b16 %v721
        %v759 = vunpack.c.l.b16 %v722
        %v760 = vunpack.c.l.b16 %v723
        %v761 = vunpack.c.l.b16 %v724
        %v762 = vunpack.c.l.b16 %v725
        %v763 = vunpack.c.l.b16 %v726
        %v764 = vunpack.c.l.b16 %v727
        %v765 = vunpack.c.l.b16 %v728
        %v766 = vunpack.c.l.b16 %v729
        %v767 = vunpack.c.l.b16 %v730
        %v768 = vunpack.c.l.b16 %v731
        %v769 = vunpack.c.l.b16 %v732
        %v770 = vunpack.c.l.b16 %v733
        %v771 = vunpack.c.l.b16 %v734
        %v772 = vunpack.c.l.b16 %v735
        %v773 = vpack.c.b16 %v758, %v757
        %v774 = vpack.c.b16 %v760, %v759
        %v775 = vpack.c.b16 %v762, %v761
        %v776 = vpack.c.b16 %v764, %v763
        %v777 = vpack.c.b16 %v766, %v765
        %v778 = vpack.c.b16 %v768, %v767
        %v779 = vpack.c.b16 %v770, %v769
        %v780 = vpack.c.b16 %v772, %v771
        %789 = vmatprep.subr.bf16.mxu0 0
        %790 = vmatpush1.bf16.msra.mxu0 %v773
        %791 = vmatprep.subr.bf16.mxu0 0
        %792 = vmatpush1.bf16.msra.mxu0 %v774
        %793 = vmatprep.subr.bf16.mxu0 0
        %794 = vmatpush1.bf16.msra.mxu0 %v775
        %795 = vmatprep.subr.bf16.mxu0 0
        %796 = vmatpush1.bf16.msra.mxu0 %v776
        %797 = vmatprep.subr.bf16.mxu0 0
        %798 = vmatpush1.bf16.msra.mxu0 %v777
        %799 = vmatprep.subr.bf16.mxu0 0
        %800 = vmatpush1.bf16.msra.mxu0 %v778
        %801 = vmatprep.subr.bf16.mxu0 0
        %802 = vmatpush1.bf16.msra.mxu0 %v779
        %803 = vmatprep.subr.bf16.mxu0 0
        %804 = vmatpush1.bf16.msra.mxu0 %v780
        %805 = vmatprep.subr.bf16.mxu0 0
        %806 = vmatpush1.bf16.msra.mxu0 0
        %807 = vmatprep.subr.bf16.mxu0 0
        %808 = vmatpush1.bf16.msra.mxu0 0
        %809 = vmatprep.subr.bf16.mxu0 0
        %810 = vmatpush1.bf16.msra.mxu0 0
        %811 = vmatprep.subr.bf16.mxu0 0
        %812 = vmatpush1.bf16.msra.mxu0 0
        %813 = vmatprep.subr.bf16.mxu0 0
        %814 = vmatpush1.bf16.msra.mxu0 0
        %815 = vmatprep.subr.bf16.mxu0 0
        %816 = vmatpush1.bf16.msra.mxu0 0
        %817 = vmatprep.subr.bf16.mxu0 0
        %818 = vmatpush1.bf16.msra.mxu0 0
        %819 = vmatprep.subr.bf16.mxu0 0
        %820 = vmatpush1.bf16.msra.mxu0 0
        %821 = vmatprep.mubr.bf16.mxu0 0
        %822 = vmatmul.mubr.bf16.gmra.mrb[0].mxu0 %v719
        %v823 = vpop.f32.mrb[0].mxu0
        %v824 = vadd.f32 %v740, %v823
        %v825 = vpop.f32.mrb[0].mxu0
        %v826 = vpop.f32.mrb[0].mxu0
        %v827 = vpop.f32.mrb[0].mxu0
        %828 = vdwg.mxu0
        %829 = vst [vmem:[%s337] sm:$0xff] %v824
        %s830 = sand.u32 %s165, 1
        %s831 = scalar_lea.sflag [#allocation4], %s830
        %s832 = sand.u32 %s165, 1
        %s833 = smul.addr %s832, 8
        %s834 = scalar_lea.vmem [#allocation13], %s833
        // Predicated region
        $region69: #{tpu_custom_call.1} parent=43 // pred_check
          %p835 = pneg %p175
        $region70: #{tpu_custom_call.1} parent=43 // pred_check_branch
          %837 = sbr.rel (%p835) target = $region72
        $region71: #{tpu_custom_call.1} parent=43 // pred_region
          %s839 = ssub.s32 128, 128
          %840 = vsyncadd %s831, %s839
          %s841 = smul.addr %s26, 128
          %s842 = scalar_lea.hbm %s6, %s841
          %s844 = sshll.u32 %s834, 4
          %s845 = int_to_ptr.vmem [resolvable:$true] %s844
          %847 = dma.vmem_to_hbm [thread:$0]  %s845, 128, %s842, %s831
        $region72: #{tpu_custom_call.1} parent=43 // pred_fallthru
          _
      $region44: #{tpu_custom_call.1} parent=5 // pred_fallthru
        _
      %p848 = scmp.le.s32.totalorder 2, %s21
      // Predicated region
      $region73: #{tpu_custom_call.1} parent=5 // pred_check
        %p849 = pneg %p848
      $region74: #{tpu_custom_call.1} parent=5 // pred_check_branch
        %851 = sbr.rel (%p849) target = $region76
      $region75: #{tpu_custom_call.1} parent=5 // pred_region
        %s852 = ssub.s32 %s21, 2
        // Predicated region
        $region77: #{tpu_custom_call.1} parent=75 // pred_check
          %p853 = pneg %p181
        $region78: #{tpu_custom_call.1} parent=75 // pred_check_branch
          %855 = sbr.rel (%p853) target = $region80
        $region79: #{tpu_custom_call.1} parent=75 // pred_region
          %s856 = sand.u32 %s166, 1
          %s857 = scalar_lea.sflag [#allocation4], %s856
          %s858 = sand.u32 %s166, 1
          %s859 = smul.addr %s858, 8
          %s860 = scalar_lea.vmem [#allocation13], %s859
          %861 = dma.done %s857, 128
        $region80: #{tpu_custom_call.1} parent=75 // pred_fallthru
          _
      $region76: #{tpu_custom_call.1} parent=5 // pred_fallthru
        _
    $region6: #{tpu_custom_call.1} parent=1 // loop_footer
      %s25 = sadd.s32 1, %s21
    $region7: #{tpu_custom_call.1} parent=1 // loop_footer_branch
      %20 = sbr.rel target = $region3
    $region8: #{tpu_custom_call.1} parent=1 // loop_exit
      _
    %862 = vsyncpa [#allocation3], 1
    %s863 = scalar_lea.sflag [#allocation3], 1
    %864 = vsyncpa %s863, 1
    %865 = vsyncpa [#allocation6], 1
    %866 = vsyncpa [#allocation9], 1
    %867 = vsyncpa [#allocation12], 1
    %868 = vsyncpa [#allocation4], 1
    %s869 = scalar_lea.sflag [#allocation4], 1
    %870 = vsyncpa %s869, 1

</llo_original>
